<compile_context>
chip_gen: v7x
topology: tpu7x:2x2x1
jax: 0.10.0
libtpu: 0.0.40
codegen_flags: <defaults>
</compile_context>

<pallas_src>
import functools

import jax
import jax.numpy as jnp
from jax.experimental import pallas as pl
from jax.experimental.pallas import tpu as pltpu


def _cdiv(a, b):
    return -(-a // b)


def _round_up(a, b):
    return _cdiv(a, b) * b


def _default_elementwise_dtype():
    """bf16 bias/ReLU path on chips with a bf16 VPU (v6e / v7x); f32 elsewhere."""
    try:
        kind = jax.devices()[0].device_kind.lower()
    except Exception:
        return jnp.float32
    return jnp.bfloat16 if ("v6" in kind or "v7" in kind) else jnp.float32


# -----------------------------------------------------------------------------
# Fused encoder kernel (channels-first).  For each of the `bt` clouds in this
# grid step: shared per-point MLP 3 -> c1 -> c2 -> c3 as (Cout, Cin) @ (Cin, tk)
# MXU matmuls on a lane-dense (points-on-lanes) chunk, then a max-reduce over
# the chunk into a (c3, bt) running-max accumulator held in the output block
# (grid axis k streams the point chunks; zero-init == final ReLU).
# The per-cloud z-rotation of pc0 is already folded into w1t_ref.
# -----------------------------------------------------------------------------
def _encoder_kernel(x_ref, w1t_ref, b1_ref, w2t_ref, b2_ref, w3t_ref, b3_ref,
                    feat_ref, *, bt, elem_dtype):
    k = pl.program_id(1)

    @pl.when(k == 0)
    def _init():
        # 0-init doubles as the final ReLU:  max_n relu(h_n) == max(0, max_n h_n).
        feat_ref[...] = jnp.zeros_like(feat_ref)

    b1 = b1_ref[...].astype(elem_dtype)        # (c1, 1)
    b2 = b2_ref[...].astype(elem_dtype)        # (c2, 1)
    b3 = b3_ref[...]                           # (c3, 1) f32
    w2t = w2t_ref[...]                         # (c2, c1) bf16
    w3t = w3t_ref[...]                         # (c3, c2) bf16

    # Static unroll over the (small) number of clouds per step; each cloud needs
    # its own layer-1 weight (rotation folded in), so layer 1 cannot be fused
    # across clouds anyway.
    pooled = []
    for b in range(bt):
        x = x_ref[b]                                                   # (3, tk) bf16
        h = jnp.dot(w1t_ref[b], x, preferred_element_type=elem_dtype)  # (c1, tk)
        h = jnp.maximum(h + b1, 0.0).astype(jnp.bfloat16)
        h = jnp.dot(w2t, h, preferred_element_type=elem_dtype)         # (c2, tk)
        h = jnp.maximum(h + b2, 0.0).astype(jnp.bfloat16)
        h = jnp.dot(w3t, h, preferred_element_type=jnp.float32) + b3   # (c3, tk) f32
        pooled.append(jnp.max(h, axis=-1, keepdims=True))              # (c3, 1)

    chunk = pooled[0] if bt == 1 else jnp.concatenate(pooled, axis=1)  # (c3, bt)
    feat_ref[0] = jnp.maximum(feat_ref[0], chunk)


def _encode_batch(x_cf, w1t_eff, b1, w2t, b2, w3t, b3, *,
                  rows_per_step=2048, point_tile=512, elem_dtype=jnp.float32):
    """x_cf: (M, 3, N) channels-first clouds; w1t_eff: (M, c1, 3) per-cloud
    layer-1 weights (rotation already folded in).  Returns (M, c3) embeddings."""
    M, C, N = x_cf.shape
    c1 = w1t_eff.shape[1]
    c2, c3 = w2t.shape[0], w3t.shape[0]
    assert C == 3 and w2t.shape[1] == c1 and w3t.shape[1] == c2

    # bf16 input halves HBM->VMEM traffic; values are cast to bf16 before the
    # first matmul anyway so numerics are unchanged.
    x_cf = x_cf.astype(jnp.bfloat16)
    w1t_eff = w1t_eff.astype(jnp.bfloat16)

    # ---- point (lane) chunking: tk is a multiple of 128; pad with copies of
    # the last point (max-pool invariant). ------------------------------------
    tk = _round_up(N, 128) if N <= point_tile else point_tile
    npts = _round_up(N, tk)
    if npts != N:
        pad = jnp.broadcast_to(x_cf[:, :, -1:], (M, 3, npts - N))
        x_cf = jnp.concatenate([x_cf, pad], axis=2)
    nk = npts // tk

    # ---- clouds per grid step: ~rows_per_step points of MXU work per step,
    # but always >= 2 grid steps so megacore / both v7x TCs get work. ---------
    bt = max(1, min(rows_per_step // tk, M, _cdiv(M, 2)))
    g = _cdiv(M, bt)
    mp = g * bt
    if mp != M:
        x_cf = jnp.concatenate(
            [x_cf, jnp.zeros((mp - M, 3, npts), x_cf.dtype)], axis=0)
        w1t_eff = jnp.concatenate(
            [w1t_eff, jnp.zeros((mp - M, c1, 3), w1t_eff.dtype)], axis=0)

    kernel = functools.partial(_encoder_kernel, bt=bt, elem_dtype=elem_dtype)
    feats = pl.pallas_call(
        kernel,
        out_shape=jax.ShapeDtypeStruct((g, c3, bt), jnp.float32),
        grid_spec=pltpu.PrefetchScalarGridSpec(
            num_scalar_prefetch=0,
            grid=(g, nk),                                    # batch tiles x point chunks
            in_specs=[
                pl.BlockSpec((bt, 3, tk), lambda i, k: (i, 0, k)),   # points (lane-dense)
                pl.BlockSpec((bt, c1, 3), lambda i, k: (i, 0, 0)),   # w1^T @ R  per cloud
                pl.BlockSpec((c1, 1), lambda i, k: (0, 0)),          # b1
                pl.BlockSpec((c2, c1), lambda i, k: (0, 0)),         # w2^T
                pl.BlockSpec((c2, 1), lambda i, k: (0, 0)),          # b2
                pl.BlockSpec((c3, c2), lambda i, k: (0, 0)),         # w3^T
                pl.BlockSpec((c3, 1), lambda i, k: (0, 0)),          # b3
            ],
            out_specs=pl.BlockSpec((1, c3, bt), lambda i, k: (i, 0, 0)),
        ),
        compiler_params=pltpu.CompilerParams(
            dimension_semantics=("parallel", "arbitrary")),
    )(x_cf, w1t_eff,
      b1.astype(jnp.float32), w2t.astype(jnp.bfloat16),
      b2.astype(jnp.float32), w3t.astype(jnp.bfloat16),
      b3.astype(jnp.float32))

    # Tiny (M, c3) feature slab: the transpose/reshape in XLA is negligible.
    feats = jnp.transpose(feats, (0, 2, 1)).reshape(mp, c3)
    return feats[:M]


def _make_rotation_z(rot_pred):
    """R for rotation about z by rot_pred * pi/4 (matches rotate_pointcloud)."""
    ang = rot_pred.astype(jnp.float32) * (jnp.pi / 4.0)
    c, s = jnp.cos(ang), jnp.sin(ang)
    B = rot_pred.shape[0]
    R = jnp.tile(jnp.eye(3, dtype=jnp.float32)[None], (B, 1, 1))
    R = R.at[:, 0, 0].set(c)
    R = R.at[:, 1, 1].set(c)
    R = R.at[:, 0, 1].set(-s)
    R = R.at[:, 1, 0].set(s)
    return R


def pointnetv2_treg_forward(pc0, pc1, rot_pred, params, *,
                            rows_per_step=2048, elem_dtype=None):
    """
    pc0, pc1 : (B, 3, N) float32 point clouds (PyTorch NCW convention)
    rot_pred : (B,) float32 in [-1, 1] (z-rotation of pc0 by rot_pred*pi/4) or None
    Returns (obj0_res_pred, obj1_res_pred, rotated_pc0_centre), each (B, 3).
    """
    B, C, N = pc0.shape
    assert C == 3 and pc1.shape == (B, 3, N)
    w1, b1, w2, b2, w3, b3, wh, bh = params
    if elem_dtype is None:
        elem_dtype = _default_elementwise_dtype()

    pc0 = pc0.astype(jnp.float32)
    pc1 = pc1.astype(jnp.float32)
    eye = jnp.tile(jnp.eye(3, dtype=jnp.float32)[None], (B, 1, 1))
    R0 = eye if rot_pred is None else _make_rotation_z(rot_pred)

    # Fold the per-cloud z-rotation into the layer-1 weight (channels-first):
    #   h1 = (w1^T) @ (R @ x) = (w1^T @ R) @ x.
    # The pc1 half uses the un-rotated weight; the clouds are fed to the kernel
    # in their native (2B, 3, N) layout -> no XLA rotate/transpose pass.
    w1t = jnp.transpose(w1)                                            # (64, 3)
    w1t_all = jnp.concatenate(
        [jnp.einsum('oc,bcj->boj', w1t, R0),
         jnp.broadcast_to(w1t[None], (B,) + w1t.shape)], axis=0)       # (2B, 64, 3)

    pc_all = jnp.concatenate([pc0, pc1], axis=0)                       # (2B, 3, N)

    feats = _encode_batch(
        pc_all, w1t_all,
        b1.reshape(-1, 1), jnp.transpose(w2), b2.reshape(-1, 1),
        jnp.transpose(w3), b3.reshape(-1, 1),
        rows_per_step=rows_per_step, elem_dtype=elem_dtype)            # (2B, 256)

    # 256 -> 3 linear head stays in XLA (a 3-lane matmul doesn't belong in-kernel).
    preds = jnp.dot(feats, wh) + bh                                    # (2B, 3)
    obj0_res_pred, obj1_res_pred = preds[:B], preds[B:]

    # Rotation is linear, so centre of the rotated cloud == R0 @ mean(pc0).
    rotated_pc0_centre = jnp.einsum('bij,bj->bi', R0, jnp.mean(pc0, axis=2))
    return obj0_res_pred, obj1_res_pred, rotated_pc0_centre


def init_params(key):
    """Deterministic synthetic parameters (encoder MLP + 256->3 head)."""
    ks = jax.random.split(key, 8)

    def w(k, shape, fan_in):
        return jax.random.normal(k, shape, jnp.float32) / jnp.sqrt(fan_in)

    w1 = w(ks[0], (3, 64), 3.0);       b1 = 0.01 * jax.random.normal(ks[1], (1, 64), jnp.float32)
    w2 = w(ks[2], (64, 128), 64.0);    b2 = 0.01 * jax.random.normal(ks[3], (1, 128), jnp.float32)
    w3 = w(ks[4], (128, 256), 128.0);  b3 = 0.01 * jax.random.normal(ks[5], (1, 256), jnp.float32)
    wh = w(ks[6], (256, 3), 256.0);    bh = 0.01 * jax.random.normal(ks[7], (1, 3), jnp.float32)
    return (w1, b1, w2, b2, w3, b3, wh, bh)


def _reference_forward(pc0, pc1, rot_pred, params):
    """Pure-JAX rotate-then-encode reference (bf16 matmul operands, f32 accum)."""
    w1, b1, w2, b2, w3, b3, wh, bh = params
    B = pc0.shape[0]
    eye = jnp.tile(jnp.eye(3, dtype=jnp.float32)[None], (B, 1, 1))
    R0 = eye if rot_pred is None else _make_rotation_z(rot_pred)
    R_all = jnp.concatenate([R0, eye], axis=0)
    pc_all = jnp.concatenate([pc0, pc1], axis=0).astype(jnp.float32)
    x = jnp.einsum('bij,bjn->bni', R_all, pc_all)                      # (2B, N, 3)

    def dense(a, w, b):
        return jnp.maximum(
            jnp.dot(a.astype(jnp.bfloat16), w.astype(jnp.bfloat16),
                    preferred_element_type=jnp.float32) + b, 0.0)

    h = dense(dense(dense(x.reshape(-1, 3), w1, b1), w2, b2), w3, b3)
    feats = jnp.max(h.reshape(2 * B, -1, w3.shape[1]), axis=1)
    preds = jnp.dot(feats, wh) + bh
    centre = jnp.einsum('bij,bj->bi', R0, jnp.mean(pc_all[:B], axis=2))
    return preds[:B], preds[B:], centre


if __name__ == "__main__":
    key = jax.random.PRNGKey(0)
    k_p, k_pc0, k_pc1, k_rot = jax.random.split(key, 4)

    B, N = 2, 128
    params = init_params(k_p)
    pc0 = jax.random.normal(k_pc0, (B, 3, N), jnp.float32)
    pc1 = jax.random.normal(k_pc1, (B, 3, N), jnp.float32)
    rot_pred = jax.random.uniform(k_rot, (B,), jnp.float32, -1.0, 1.0)

    fwd = jax.jit(pointnetv2_treg_forward)
    obj0, obj1, centre = fwd(pc0, pc1, rot_pred, params)
    jax.block_until_ready((obj0, obj1, centre))
    assert obj0.shape == (B, 3) and obj1.shape == (B, 3) and centre.shape == (B, 3)

    # Numerical sanity check against the pure-JAX reference (tolerance covers
    # bf16 operand rounding + the rotation-fold reassociation).
    r0, r1, rc = _reference_forward(pc0, pc1, rot_pred, params)
    assert jnp.allclose(obj0, r0, atol=3e-2, rtol=3e-2)
    assert jnp.allclose(obj1, r1, atol=3e-2, rtol=3e-2)
    assert jnp.allclose(centre, rc, atol=1e-4, rtol=1e-4)

    print("KERNEL_OK")
</pallas_src>

<mosaic_0001>
module attributes {stable_mosaic.version = 11 : i64} {
  func.func @_encoder_kernel(%arg0: i32, %arg1: i32, %arg2: memref<2x3x128xbf16, #tpu.memory_space<vmem>>, %arg3: memref<2x64x3xbf16, #tpu.memory_space<vmem>>, %arg4: memref<64x1xf32, #tpu.memory_space<vmem>>, %arg5: memref<128x64xbf16, #tpu.memory_space<vmem>>, %arg6: memref<128x1xf32, #tpu.memory_space<vmem>>, %arg7: memref<256x128xbf16, #tpu.memory_space<vmem>>, %arg8: memref<256x1xf32, #tpu.memory_space<vmem>>, %arg9: memref<1x256x2xf32, #tpu.memory_space<vmem>>) attributes {dimension_semantics = [#tpu.dimension_semantics<parallel>, #tpu.dimension_semantics<arbitrary>], iteration_bounds = array<i64: 2, 1>, scalar_prefetch = 0 : i64, scratch_operands = 0 : i64, tpu.core_type = #tpu.core_type<tc>, window_params = [{transform_indices = @transform_0, window_bounds = array<i64: 2, 3, 128>}, {transform_indices = @transform_1, window_bounds = array<i64: 2, 64, 3>}, {pipeline_mode = #tpu.pipeline_mode<synchronous>, transform_indices = @transform_2, window_bounds = array<i64: 64, 1>}, {pipeline_mode = #tpu.pipeline_mode<synchronous>, transform_indices = @transform_3, window_bounds = array<i64: 128, 64>}, {pipeline_mode = #tpu.pipeline_mode<synchronous>, transform_indices = @transform_4, window_bounds = array<i64: 128, 1>}, {pipeline_mode = #tpu.pipeline_mode<synchronous>, transform_indices = @transform_5, window_bounds = array<i64: 256, 128>}, {pipeline_mode = #tpu.pipeline_mode<synchronous>, transform_indices = @transform_6, window_bounds = array<i64: 256, 1>}, {transform_indices = @transform_7, window_bounds = array<i64: 1, 256, 2>}]} {
    %c0_i32 = arith.constant 0 : i32
    %0 = arith.cmpi eq, %arg1, %c0_i32 : i32
    %1 = arith.extui %0 : i1 to i32
    %c0_i32_0 = arith.constant 0 : i32
    %2 = arith.cmpi ne, %1, %c0_i32_0 : i32
    scf.if %2 {
      %cst_38 = arith.constant 0.000000e+00 : f32
      %57 = vector.broadcast %cst_38 : f32 to vector<1x256x2xf32>
      %c0_39 = arith.constant 0 : index
      %c0_40 = arith.constant 0 : index
      %c0_41 = arith.constant 0 : index
      %58 = vector.load %arg9[%c0_39, %c0_40, %c0_41] : memref<1x256x2xf32, #tpu.memory_space<vmem>>, vector<1x256x2xf32>
      tpu.vector_store %arg9[%c0_39, %c0_40, %c0_41], %57 {strides = array<i32>} : memref<1x256x2xf32, #tpu.memory_space<vmem>>, vector<1x256x2xf32>,
    } else {
    }
    %c0 = arith.constant 0 : index
    %c0_1 = arith.constant 0 : index
    %3 = vector.load %arg4[%c0, %c0_1] : memref<64x1xf32, #tpu.memory_space<vmem>>, vector<64x1xf32>
    %c0_2 = arith.constant 0 : index
    %c0_3 = arith.constant 0 : index
    %4 = vector.load %arg6[%c0_2, %c0_3] : memref<128x1xf32, #tpu.memory_space<vmem>>, vector<128x1xf32>
    %c0_4 = arith.constant 0 : index
    %c0_5 = arith.constant 0 : index
    %5 = vector.load %arg8[%c0_4, %c0_5] : memref<256x1xf32, #tpu.memory_space<vmem>>, vector<256x1xf32>
    %c0_6 = arith.constant 0 : index
    %c0_7 = arith.constant 0 : index
    %6 = vector.load %arg5[%c0_6, %c0_7] : memref<128x64xbf16, #tpu.memory_space<vmem>>, vector<128x64xbf16>
    %c0_8 = arith.constant 0 : index
    %c0_9 = arith.constant 0 : index
    %7 = vector.load %arg7[%c0_8, %c0_9] : memref<256x128xbf16, #tpu.memory_space<vmem>>, vector<256x128xbf16>
    %c0_10 = arith.constant 0 : index
    %c0_11 = arith.constant 0 : index
    %c0_12 = arith.constant 0 : index
    %8 = vector.load %arg2[%c0_10, %c0_11, %c0_12] : memref<2x3x128xbf16, #tpu.memory_space<vmem>>, vector<1x3x128xbf16>
    %9 = vector.shape_cast %8 : vector<1x3x128xbf16> to vector<3x128xbf16>
    %c0_13 = arith.constant 0 : index
    %c0_14 = arith.constant 0 : index
    %c0_15 = arith.constant 0 : index
    %10 = vector.load %arg3[%c0_13, %c0_14, %c0_15] : memref<2x64x3xbf16, #tpu.memory_space<vmem>>, vector<1x64x3xbf16>
    %11 = vector.shape_cast %10 : vector<1x64x3xbf16> to vector<64x3xbf16>
    %cst = arith.constant dense<0.000000e+00> : vector<64x128xf32>
    %12 = tpu.matmul %11, %9, %cst {dimension_numbers = #tpu.dot_dimension_numbers<[1], [0], [0], [1], [0, 0, 1, 1], [], []>} : vector<64x3xbf16>, vector<3x128xbf16>, vector<64x128xf32> -> vector<64x128xf32>
    %13 = vector.broadcast %3 : vector<64x1xf32> to vector<64x128xf32>
    %14 = arith.addf %12, %13 : vector<64x128xf32>
    %cst_16 = arith.constant 0.000000e+00 : f32
    %15 = vector.broadcast %cst_16 : f32 to vector<64x128xf32>
    %16 = arith.maximumf %14, %15 : vector<64x128xf32>
    %17 = arith.truncf %16 : vector<64x128xf32> to vector<64x128xbf16>
    %cst_17 = arith.constant dense<0.000000e+00> : vector<128x128xf32>
    %18 = tpu.matmul %6, %17, %cst_17 {dimension_numbers = #tpu.dot_dimension_numbers<[1], [0], [0], [1], [0, 0, 1, 1], [], []>} : vector<128x64xbf16>, vector<64x128xbf16>, vector<128x128xf32> -> vector<128x128xf32>
    %19 = vector.broadcast %4 : vector<128x1xf32> to vector<128x128xf32>
    %20 = arith.addf %18, %19 : vector<128x128xf32>
    %cst_18 = arith.constant 0.000000e+00 : f32
    %21 = vector.broadcast %cst_18 : f32 to vector<128x128xf32>
    %22 = arith.maximumf %20, %21 : vector<128x128xf32>
    %23 = arith.truncf %22 : vector<128x128xf32> to vector<128x128xbf16>
    %cst_19 = arith.constant dense<0.000000e+00> : vector<256x128xf32>
    %24 = tpu.matmul %7, %23, %cst_19 {dimension_numbers = #tpu.dot_dimension_numbers<[1], [0], [0], [1], [0, 0, 1, 1], [], []>} : vector<256x128xbf16>, vector<128x128xbf16>, vector<256x128xf32> -> vector<256x128xf32>
    %25 = vector.broadcast %5 : vector<256x1xf32> to vector<256x128xf32>
    %26 = arith.addf %24, %25 : vector<256x128xf32>
    %cst_20 = arith.constant dense<0xFF800000> : vector<256xf32>
    %27 = vector.multi_reduction <maximumf>, %26, %cst_20 [1] : vector<256x128xf32> to vector<256xf32>
    %28 = vector.shape_cast %27 : vector<256xf32> to vector<256x1xf32>
    %c1 = arith.constant 1 : index
    %c0_21 = arith.constant 0 : index
    %c0_22 = arith.constant 0 : index
    %29 = vector.load %arg2[%c1, %c0_21, %c0_22] : memref<2x3x128xbf16, #tpu.memory_space<vmem>>, vector<1x3x128xbf16>
    %30 = vector.shape_cast %29 : vector<1x3x128xbf16> to vector<3x128xbf16>
    %c1_23 = arith.constant 1 : index
    %c0_24 = arith.constant 0 : index
    %c0_25 = arith.constant 0 : index
    %31 = vector.load %arg3[%c1_23, %c0_24, %c0_25] : memref<2x64x3xbf16, #tpu.memory_space<vmem>>, vector<1x64x3xbf16>
    %32 = vector.shape_cast %31 : vector<1x64x3xbf16> to vector<64x3xbf16>
    %cst_26 = arith.constant dense<0.000000e+00> : vector<64x128xf32>
    %33 = tpu.matmul %32, %30, %cst_26 {dimension_numbers = #tpu.dot_dimension_numbers<[1], [0], [0], [1], [0, 0, 1, 1], [], []>} : vector<64x3xbf16>, vector<3x128xbf16>, vector<64x128xf32> -> vector<64x128xf32>
    %34 = vector.broadcast %3 : vector<64x1xf32> to vector<64x128xf32>
    %35 = arith.addf %33, %34 : vector<64x128xf32>
    %cst_27 = arith.constant 0.000000e+00 : f32
    %36 = vector.broadcast %cst_27 : f32 to vector<64x128xf32>
    %37 = arith.maximumf %35, %36 : vector<64x128xf32>
    %38 = arith.truncf %37 : vector<64x128xf32> to vector<64x128xbf16>
    %cst_28 = arith.constant dense<0.000000e+00> : vector<128x128xf32>
    %39 = tpu.matmul %6, %38, %cst_28 {dimension_numbers = #tpu.dot_dimension_numbers<[1], [0], [0], [1], [0, 0, 1, 1], [], []>} : vector<128x64xbf16>, vector<64x128xbf16>, vector<128x128xf32> -> vector<128x128xf32>
    %40 = vector.broadcast %4 : vector<128x1xf32> to vector<128x128xf32>
    %41 = arith.addf %39, %40 : vector<128x128xf32>
    %cst_29 = arith.constant 0.000000e+00 : f32
    %42 = vector.broadcast %cst_29 : f32 to vector<128x128xf32>
    %43 = arith.maximumf %41, %42 : vector<128x128xf32>
    %44 = arith.truncf %43 : vector<128x128xf32> to vector<128x128xbf16>
    %cst_30 = arith.constant dense<0.000000e+00> : vector<256x128xf32>
    %45 = tpu.matmul %7, %44, %cst_30 {dimension_numbers = #tpu.dot_dimension_numbers<[1], [0], [0], [1], [0, 0, 1, 1], [], []>} : vector<256x128xbf16>, vector<128x128xbf16>, vector<256x128xf32> -> vector<256x128xf32>
    %46 = vector.broadcast %5 : vector<256x1xf32> to vector<256x128xf32>
    %47 = arith.addf %45, %46 : vector<256x128xf32>
    %cst_31 = arith.constant dense<0xFF800000> : vector<256xf32>
    %48 = vector.multi_reduction <maximumf>, %47, %cst_31 [1] : vector<256x128xf32> to vector<256xf32>
    %49 = vector.shape_cast %48 : vector<256xf32> to vector<256x1xf32>
    %50 = tpu.concatenate %28, %49 in 1 : vector<256x1xf32>, vector<256x1xf32> -> vector<256x2xf32>
    %c0_32 = arith.constant 0 : index
    %c0_33 = arith.constant 0 : index
    %c0_34 = arith.constant 0 : index
    %51 = vector.load %arg9[%c0_32, %c0_33, %c0_34] : memref<1x256x2xf32, #tpu.memory_space<vmem>>, vector<1x256x2xf32>
    %52 = vector.shape_cast %51 : vector<1x256x2xf32> to vector<256x2xf32>
    %53 = arith.maximumf %52, %50 : vector<256x2xf32>
    %c0_35 = arith.constant 0 : index
    %c0_36 = arith.constant 0 : index
    %c0_37 = arith.constant 0 : index
    %54 = vector.load %arg9[%c0_35, %c0_36, %c0_37] : memref<1x256x2xf32, #tpu.memory_space<vmem>>, vector<1x256x2xf32>
    %55 = vector.shape_cast %54 : vector<1x256x2xf32> to vector<256x2xf32>
    %56 = vector.shape_cast %53 : vector<256x2xf32> to vector<1x256x2xf32>
    tpu.vector_store %arg9[%c0_35, %c0_36, %c0_37], %56 {strides = array<i32>} : memref<1x256x2xf32, #tpu.memory_space<vmem>>, vector<1x256x2xf32>,
    return
  }
  func.func @transform_0(%arg0: i32, %arg1: i32) -> (i32, i32, i32) {
    %c0_i32 = arith.constant 0 : i32
    %c0_i32_0 = arith.constant 0 : i32
    return %arg0, %c0_i32, %arg1 : i32, i32, i32
  }
  func.func @transform_1(%arg0: i32, %arg1: i32) -> (i32, i32, i32) {
    %c0_i32 = arith.constant 0 : i32
    %c0_i32_0 = arith.constant 0 : i32
    %c0_i32_1 = arith.constant 0 : i32
    return %arg0, %c0_i32, %c0_i32_0 : i32, i32, i32
  }
  func.func @transform_2(%arg0: i32, %arg1: i32) -> (i32, i32) {
    %c0_i32 = arith.constant 0 : i32
    %c0_i32_0 = arith.constant 0 : i32
    %c0_i32_1 = arith.constant 0 : i32
    return %c0_i32, %c0_i32_0 : i32, i32
  }
  func.func @transform_3(%arg0: i32, %arg1: i32) -> (i32, i32) {
    %c0_i32 = arith.constant 0 : i32
    %c0_i32_0 = arith.constant 0 : i32
    %c0_i32_1 = arith.constant 0 : i32
    return %c0_i32, %c0_i32_0 : i32, i32
  }
  func.func @transform_4(%arg0: i32, %arg1: i32) -> (i32, i32) {
    %c0_i32 = arith.constant 0 : i32
    %c0_i32_0 = arith.constant 0 : i32
    %c0_i32_1 = arith.constant 0 : i32
    return %c0_i32, %c0_i32_0 : i32, i32
  }
  func.func @transform_5(%arg0: i32, %arg1: i32) -> (i32, i32) {
    %c0_i32 = arith.constant 0 : i32
    %c0_i32_0 = arith.constant 0 : i32
    %c0_i32_1 = arith.constant 0 : i32
    return %c0_i32, %c0_i32_0 : i32, i32
  }
  func.func @transform_6(%arg0: i32, %arg1: i32) -> (i32, i32) {
    %c0_i32 = arith.constant 0 : i32
    %c0_i32_0 = arith.constant 0 : i32
    %c0_i32_1 = arith.constant 0 : i32
    return %c0_i32, %c0_i32_0 : i32, i32
  }
  func.func @transform_7(%arg0: i32, %arg1: i32) -> (i32, i32, i32) {
    %c0_i32 = arith.constant 0 : i32
    %c0_i32_0 = arith.constant 0 : i32
    %c0_i32_1 = arith.constant 0 : i32
    return %arg0, %c0_i32, %c0_i32_0 : i32, i32, i32
  }
}

</mosaic_0001>

<llo_original>
// kernel: pointnetv2_treg_forward.1
$region0: #{pointnetv2_treg_forward.1}
  #allocation0 [shape = 'u32[]', space=smem, size = 0x4, offset = 0x4, fixed_abs, tag = 'smem constant byte address 0x4 - core index']
  #allocation1 [shape = 'u32[144,128]{1,0:T(1,128)}', space=vmem, size = 0x12000, scoped, tag = 'internal scratch']
  %s0 = inlined_call_operand.vmem [shape: bf16[4,3,128], index: 0, kind: input, shape index: {}]
  %s1 = inlined_call_operand.vmem [shape: bf16[4,64,3], index: 1, kind: input, shape index: {}]
  %s2 = inlined_call_operand.vmem [shape: f32[64,1], index: 2, kind: input, shape index: {}]
  %s3 = inlined_call_operand.vmem [shape: bf16[128,64], index: 3, kind: input, shape index: {}]
  %s4 = inlined_call_operand.vmem [shape: f32[128,1], index: 4, kind: input, shape index: {}]
  %s5 = inlined_call_operand.vmem [shape: bf16[256,128], index: 5, kind: input, shape index: {}]
  %s6 = inlined_call_operand.vmem [shape: f32[256,1], index: 6, kind: input, shape index: {}]
  %s7 = inlined_call_operand.vmem [shape: f32[2,256,2], index: 7, kind: output, shape index: {}]
  %s8 = sld [smem:[#allocation0]]
  $region65: #{pointnetv2_treg_forward.1} parent=0
    _
  %s10 = ssub.s32 1, %s8
  %s11 = scalar_select 0, %s10, %s8
  loop: start=0, step=1, limit=4
  $region2: #{pointnetv2_treg_forward.1} parent=0 // loop_pre_header
    _
  $region3: #{pointnetv2_treg_forward.1} parent=0 // loop_header
    %s13 = sphi 0, %s17
    %p14 = scmp.ge.s32.totalorder %s13, 4
    %s20 = sphi 0, %s32
    %s21 = sphi 0, %s28
    %s22 = sphi 0, %s20
    %s23 = sphi 0, %s21
    %s24 = sphi 0, %s22
    %s25 = sphi 0, %s23
    %s37 = sphi 0, %s39
    %s40 = sphi 0, %s37
    %s41 = sphi 0, %s40
    %s57 = sphi 0, %s41
    %s63 = sphi 0, %s65
    %s66 = sphi 0, %s63
    %s67 = sphi 0, %s66
    %s83 = sphi 0, %s67
    %s87 = sphi 0, %s87
    %s89 = sphi 0, %s87
    %s90 = sphi 0, %s89
    %s104 = sphi 0, %s90
    %s108 = sphi 0, %s108
    %s110 = sphi 0, %s108
    %s111 = sphi 0, %s110
    %s125 = sphi 0, %s111
    %s129 = sphi 0, %s129
    %s131 = sphi 0, %s129
    %s132 = sphi 0, %s131
    %s146 = sphi 0, %s132
    %s150 = sphi 0, %s150
    %s152 = sphi 0, %s150
    %s153 = sphi 0, %s152
    %s167 = sphi 0, %s153
    %s171 = sphi 0, %s171
    %s173 = sphi 0, %s171
    %s174 = sphi 0, %s173
    %s188 = sphi 0, %s174
    %s194 = sphi 0, %s196
    %s197 = sphi 0, %s194
    %s198 = sphi 0, %s197
    %s214 = sphi 0, %s198
  $region4: #{pointnetv2_treg_forward.1} parent=0 // loop_header_branch
    %16 = sbr.rel (%p14) target = $region8
  $region5: #{pointnetv2_treg_forward.1} parent=0 // loop_body
    %s18 = ssub.s32 %s13, 1
    %s19 = ssub.s32 %s13, 2
    %s26 = sadd.s32 1, %s21
    %p27 = scmp.ge.s32.totalorder %s26, 1
    %s28 = scalar_select %p27, 0, %s26
    %s29 = sadd.s32 1, %s20
    %s30 = scalar_select %p27, %s29, %s20
    %p31 = scmp.ge.s32.totalorder %s30, 2
    %s32 = scalar_select %p31, 0, %s30
    %s33 = ssub.s32 %s20, %s32
    %s34 = ssub.s32 %s21, %s28
    %s35 = sor.u32 %s33, %s34
    %p36 = scmp.eq.s32.totalorder %s35, 0
    %s38 = sadd.s32 %s37, 1
    %s39 = scalar_select %p36, %s37, %s38
    %p42 = pneg %p36
    %p43 = scmp.eq.s32.totalorder %s13, 1
    %p44 = por %p42, %p43
    %p45 = scmp.ne.s32.totalorder %s37, %s40
    %p46 = scmp.eq.s32.totalorder %s13, 0
    %p47 = por %p45, %p46
    %p48 = scmp.ne.s32.totalorder %s37, %s40
    %p49 = scmp.eq.s32.totalorder %s18, 1
    %p50 = por %p48, %p49
    %p51 = scmp.ne.s32.totalorder %s40, %s41
    %p52 = scmp.eq.s32.totalorder %s18, 0
    %p53 = por %p51, %p52
    %p54 = scmp.ne.s32.totalorder %s40, %s41
    %p55 = scmp.eq.s32.totalorder %s19, 1
    %p56 = por %p54, %p55
    %p58 = scmp.ne.s32.totalorder %s41, %s57
    %p59 = scmp.eq.s32.totalorder %s19, 0
    %p60 = por %p58, %p59
    %s61 = ssub.s32 %s20, %s32
    %p62 = scmp.eq.s32.totalorder %s61, 0
    %s64 = sadd.s32 %s63, 1
    %s65 = scalar_select %p62, %s63, %s64
    %p68 = pneg %p62
    %p69 = scmp.eq.s32.totalorder %s13, 1
    %p70 = por %p68, %p69
    %p71 = scmp.ne.s32.totalorder %s63, %s66
    %p72 = scmp.eq.s32.totalorder %s13, 0
    %p73 = por %p71, %p72
    %p74 = scmp.ne.s32.totalorder %s63, %s66
    %p75 = scmp.eq.s32.totalorder %s18, 1
    %p76 = por %p74, %p75
    %p77 = scmp.ne.s32.totalorder %s66, %s67
    %p78 = scmp.eq.s32.totalorder %s18, 0
    %p79 = por %p77, %p78
    %p80 = scmp.ne.s32.totalorder %s66, %s67
    %p81 = scmp.eq.s32.totalorder %s19, 1
    %p82 = por %p80, %p81
    %p84 = scmp.ne.s32.totalorder %s67, %s83
    %p85 = scmp.eq.s32.totalorder %s19, 0
    %p86 = por %p84, %p85
    %s88 = sadd.s32 %s87, 1
    %p91 = scmp.eq.s32.totalorder %s13, 1
    %p92 = scmp.ne.s32.totalorder %s87, %s89
    %p93 = scmp.eq.s32.totalorder %s13, 0
    %p94 = por %p92, %p93
    %p95 = scmp.ne.s32.totalorder %s87, %s89
    %p96 = scmp.eq.s32.totalorder %s18, 1
    %p97 = por %p95, %p96
    %p98 = scmp.ne.s32.totalorder %s89, %s90
    %p99 = scmp.eq.s32.totalorder %s18, 0
    %p100 = por %p98, %p99
    %p101 = scmp.ne.s32.totalorder %s89, %s90
    %p102 = scmp.eq.s32.totalorder %s19, 1
    %p103 = por %p101, %p102
    %p105 = scmp.ne.s32.totalorder %s90, %s104
    %p106 = scmp.eq.s32.totalorder %s19, 0
    %p107 = por %p105, %p106
    %s109 = sadd.s32 %s108, 1
    %p112 = scmp.eq.s32.totalorder %s13, 1
    %p113 = scmp.ne.s32.totalorder %s108, %s110
    %p114 = scmp.eq.s32.totalorder %s13, 0
    %p115 = por %p113, %p114
    %p116 = scmp.ne.s32.totalorder %s108, %s110
    %p117 = scmp.eq.s32.totalorder %s18, 1
    %p118 = por %p116, %p117
    %p119 = scmp.ne.s32.totalorder %s110, %s111
    %p120 = scmp.eq.s32.totalorder %s18, 0
    %p121 = por %p119, %p120
    %p122 = scmp.ne.s32.totalorder %s110, %s111
    %p123 = scmp.eq.s32.totalorder %s19, 1
    %p124 = por %p122, %p123
    %p126 = scmp.ne.s32.totalorder %s111, %s125
    %p127 = scmp.eq.s32.totalorder %s19, 0
    %p128 = por %p126, %p127
    %s130 = sadd.s32 %s129, 1
    %p133 = scmp.eq.s32.totalorder %s13, 1
    %p134 = scmp.ne.s32.totalorder %s129, %s131
    %p135 = scmp.eq.s32.totalorder %s13, 0
    %p136 = por %p134, %p135
    %p137 = scmp.ne.s32.totalorder %s129, %s131
    %p138 = scmp.eq.s32.totalorder %s18, 1
    %p139 = por %p137, %p138
    %p140 = scmp.ne.s32.totalorder %s131, %s132
    %p141 = scmp.eq.s32.totalorder %s18, 0
    %p142 = por %p140, %p141
    %p143 = scmp.ne.s32.totalorder %s131, %s132
    %p144 = scmp.eq.s32.totalorder %s19, 1
    %p145 = por %p143, %p144
    %p147 = scmp.ne.s32.totalorder %s132, %s146
    %p148 = scmp.eq.s32.totalorder %s19, 0
    %p149 = por %p147, %p148
    %s151 = sadd.s32 %s150, 1
    %p154 = scmp.eq.s32.totalorder %s13, 1
    %p155 = scmp.ne.s32.totalorder %s150, %s152
    %p156 = scmp.eq.s32.totalorder %s13, 0
    %p157 = por %p155, %p156
    %p158 = scmp.ne.s32.totalorder %s150, %s152
    %p159 = scmp.eq.s32.totalorder %s18, 1
    %p160 = por %p158, %p159
    %p161 = scmp.ne.s32.totalorder %s152, %s153
    %p162 = scmp.eq.s32.totalorder %s18, 0
    %p163 = por %p161, %p162
    %p164 = scmp.ne.s32.totalorder %s152, %s153
    %p165 = scmp.eq.s32.totalorder %s19, 1
    %p166 = por %p164, %p165
    %p168 = scmp.ne.s32.totalorder %s153, %s167
    %p169 = scmp.eq.s32.totalorder %s19, 0
    %p170 = por %p168, %p169
    %s172 = sadd.s32 %s171, 1
    %p175 = scmp.eq.s32.totalorder %s13, 1
    %p176 = scmp.ne.s32.totalorder %s171, %s173
    %p177 = scmp.eq.s32.totalorder %s13, 0
    %p178 = por %p176, %p177
    %p179 = scmp.ne.s32.totalorder %s171, %s173
    %p180 = scmp.eq.s32.totalorder %s18, 1
    %p181 = por %p179, %p180
    %p182 = scmp.ne.s32.totalorder %s173, %s174
    %p183 = scmp.eq.s32.totalorder %s18, 0
    %p184 = por %p182, %p183
    %p185 = scmp.ne.s32.totalorder %s173, %s174
    %p186 = scmp.eq.s32.totalorder %s19, 1
    %p187 = por %p185, %p186
    %p189 = scmp.ne.s32.totalorder %s174, %s188
    %p190 = scmp.eq.s32.totalorder %s19, 0
    %p191 = por %p189, %p190
    %s192 = ssub.s32 %s20, %s32
    %p193 = scmp.eq.s32.totalorder %s192, 0
    %s195 = sadd.s32 %s194, 1
    %s196 = scalar_select %p193, %s194, %s195
    %p199 = pneg %p193
    %p200 = scmp.eq.s32.totalorder %s13, 1
    %p201 = por %p199, %p200
    %p202 = scmp.ne.s32.totalorder %s194, %s197
    %p203 = scmp.eq.s32.totalorder %s13, 0
    %p204 = por %p202, %p203
    %p205 = scmp.ne.s32.totalorder %s194, %s197
    %p206 = scmp.eq.s32.totalorder %s18, 1
    %p207 = por %p205, %p206
    %p208 = scmp.ne.s32.totalorder %s197, %s198
    %p209 = scmp.eq.s32.totalorder %s18, 0
    %p210 = por %p208, %p209
    %p211 = scmp.ne.s32.totalorder %s197, %s198
    %p212 = scmp.eq.s32.totalorder %s19, 1
    %p213 = por %p211, %p212
    %p215 = scmp.ne.s32.totalorder %s198, %s214
    %p216 = scmp.eq.s32.totalorder %s19, 0
    %p217 = por %p215, %p216
    %p218 = scmp.le.s32.totalorder 1, %s13
    %p219 = scmp.lt.s32.totalorder %s13, 3
    %p220 = pnand %p218, %p219
    %p221 = pneg %p220
    // Predicated region
    $region9: #{pointnetv2_treg_forward.1} parent=5 // pred_check
      _
    $region10: #{pointnetv2_treg_forward.1} parent=5 // pred_check_branch
      %223 = sbr.rel (%p220) target = $region12
    $region11: #{pointnetv2_treg_forward.1} parent=5 // pred_region
      %s224 = ssub.s32 %s13, 1
      // Predicated region
      $region13: #{pointnetv2_treg_forward.1} parent=11 // pred_check
        %p225 = pneg %p100
      $region14: #{pointnetv2_treg_forward.1} parent=11 // pred_check_branch
        %227 = sbr.rel (%p225) target = $region16
      $region15: #{pointnetv2_treg_forward.1} parent=11 // pred_region
        _
      $region16: #{pointnetv2_treg_forward.1} parent=11 // pred_fallthru
        _
      // Predicated region
      $region17: #{pointnetv2_treg_forward.1} parent=11 // pred_check
        %p228 = pneg %p121
      $region18: #{pointnetv2_treg_forward.1} parent=11 // pred_check_branch
        %230 = sbr.rel (%p228) target = $region20
      $region19: #{pointnetv2_treg_forward.1} parent=11 // pred_region
        _
      $region20: #{pointnetv2_treg_forward.1} parent=11 // pred_fallthru
        _
      // Predicated region
      $region21: #{pointnetv2_treg_forward.1} parent=11 // pred_check
        %p231 = pneg %p142
      $region22: #{pointnetv2_treg_forward.1} parent=11 // pred_check_branch
        %233 = sbr.rel (%p231) target = $region24
      $region23: #{pointnetv2_treg_forward.1} parent=11 // pred_region
        _
      $region24: #{pointnetv2_treg_forward.1} parent=11 // pred_fallthru
        _
      // Predicated region
      $region25: #{pointnetv2_treg_forward.1} parent=11 // pred_check
        %p234 = pneg %p163
      $region26: #{pointnetv2_treg_forward.1} parent=11 // pred_check_branch
        %236 = sbr.rel (%p234) target = $region28
      $region27: #{pointnetv2_treg_forward.1} parent=11 // pred_region
        _
      $region28: #{pointnetv2_treg_forward.1} parent=11 // pred_fallthru
        _
      // Predicated region
      $region29: #{pointnetv2_treg_forward.1} parent=11 // pred_check
        %p237 = pneg %p184
      $region30: #{pointnetv2_treg_forward.1} parent=11 // pred_check_branch
        %239 = sbr.rel (%p237) target = $region32
      $region31: #{pointnetv2_treg_forward.1} parent=11 // pred_region
        _
      $region32: #{pointnetv2_treg_forward.1} parent=11 // pred_fallthru
        _
    $region12: #{pointnetv2_treg_forward.1} parent=5 // pred_fallthru
      _
    %p240 = scmp.lt.s32.totalorder %s13, 2
    // Predicated region
    $region33: #{pointnetv2_treg_forward.1} parent=5 // pred_check
      %p241 = pneg %p240
    $region34: #{pointnetv2_treg_forward.1} parent=5 // pred_check_branch
      %243 = sbr.rel (%p241) target = $region36
    $region35: #{pointnetv2_treg_forward.1} parent=5 // pred_region
      // Predicated region
      $region37: #{pointnetv2_treg_forward.1} parent=35 // pred_check
        %p244 = pneg %p47
      $region38: #{pointnetv2_treg_forward.1} parent=35 // pred_check_branch
        %246 = sbr.rel (%p244) target = $region40
      $region39: #{pointnetv2_treg_forward.1} parent=35 // pred_region
        %s247 = smul.u32 2, %s20
        %p248 = scmp.lt.s32.totalorder %s247, 3
        %s249 = scalar_select %p248, %s247, 3
        %p250 = scmp.lt.s32.totalorder %s21, 0
        %s251 = scalar_select %p250, %s21, 0
        %s252 = sadd.s32 %s251, %s249
        %s253 = smul.addr %s252, 2
        %s254 = scalar_lea.vmem %s0, %s253
        %s255 = smul.u32 2, %s20
      $region40: #{pointnetv2_treg_forward.1} parent=35 // pred_fallthru
        _
      // Predicated region
      $region41: #{pointnetv2_treg_forward.1} parent=35 // pred_check
        %p256 = pneg %p73
      $region42: #{pointnetv2_treg_forward.1} parent=35 // pred_check_branch
        %258 = sbr.rel (%p256) target = $region44
      $region43: #{pointnetv2_treg_forward.1} parent=35 // pred_region
        %s259 = smul.u32 2, %s20
        %p260 = scmp.lt.s32.totalorder %s259, 3
        %s261 = scalar_select %p260, %s259, 3
        %s262 = smul.addr %s261, 8
        %s263 = smul.addr %s262, 4
        %s264 = scalar_lea.vmem %s1, %s263
        %s265 = smul.u32 2, %s20
      $region44: #{pointnetv2_treg_forward.1} parent=35 // pred_fallthru
        _
    $region36: #{pointnetv2_treg_forward.1} parent=5 // pred_fallthru
      _
    %p266 = scmp.le.s32.totalorder 1, %s13
    %p267 = scmp.lt.s32.totalorder %s13, 3
    %p268 = pnand %p266, %p267
    %p269 = pneg %p268
    // Predicated region
    $region45: #{pointnetv2_treg_forward.1} parent=5 // pred_check
      _
    $region46: #{pointnetv2_treg_forward.1} parent=5 // pred_check_branch
      %271 = sbr.rel (%p268) target = $region48
    $region47: #{pointnetv2_treg_forward.1} parent=5 // pred_region
      %s272 = ssub.s32 %s13, 1
      %s273 = smul.u32 2, %s22
      %p274 = scmp.lt.s32.totalorder %s273, 3
      %s275 = scalar_select %p274, %s273, 3
      %p276 = scmp.lt.s32.totalorder %s23, 0
      %s277 = scalar_select %p276, %s23, 0
      %s278 = sadd.s32 %s277, %s275
      %s279 = smul.addr %s278, 2
      %s280 = scalar_lea.vmem %s0, %s279
      %p281 = pneg %p53
      %p282 = pneg %p50
      %s283 = smul.u32 2, %s22
      %p284 = scmp.lt.s32.totalorder %s283, 3
      %s285 = scalar_select %p284, %s283, 3
      %s286 = smul.addr %s285, 8
      %s287 = smul.addr %s286, 4
      %s288 = scalar_lea.vmem %s1, %s287
      %p289 = pneg %p79
      %p290 = pneg %p76
      %p291 = pneg %p100
      %p292 = pneg %p97
      %p293 = pneg %p121
      %p294 = pneg %p118
      %p295 = pneg %p142
      %p296 = pneg %p139
      %p297 = pneg %p163
      %p298 = pneg %p160
      %p299 = pneg %p184
      %p300 = pneg %p181
      %p301 = pneg %p210
      %p302 = pneg %p207
      %p303 = scmp.lt.s32.totalorder %s22, 1
      %s304 = scalar_select %p303, %s22, 1
      %s305 = smul.addr %s304, 32
      %s306 = smul.addr %s305, 8
      %s307 = scalar_lea.vmem %s7, %s306
      %s308 = smul.u32 2, %s22
      %p309 = scmp.lt.s32.totalorder %s308, 3
      %s310 = scalar_select %p309, %s308, 3
      %p311 = scmp.lt.s32.totalorder %s23, 0
      %s312 = scalar_select %p311, %s23, 0
      %s313 = sadd.s32 %s312, %s310
      %s314 = smul.addr %s313, 2
      %s315 = scalar_lea.vmem %s0, %s314
      %s316 = smul.u32 2, %s22
      %s317 = smul.u32 2, %s22
      %p318 = scmp.lt.s32.totalorder %s317, 3
      %s319 = scalar_select %p318, %s317, 3
      %s320 = smul.addr %s319, 8
      %s321 = smul.addr %s320, 4
      %s322 = scalar_lea.vmem %s1, %s321
      %s323 = smul.u32 2, %s22
      %p324 = scmp.lt.s32.totalorder %s22, 1
      %s325 = scalar_select %p324, %s22, 1
      %s326 = smul.addr %s325, 32
      %s327 = smul.addr %s326, 8
      %s328 = scalar_lea.vmem %s7, %s327
      %p330 = scmp.eq.s32.totalorder %s23, 0
      // Predicated region
      $region49: #{pointnetv2_treg_forward.1} parent=47 // pred_check
        %p331 = pneg %p330
      $region50: #{pointnetv2_treg_forward.1} parent=47 // pred_check_branch
        %333 = sbr.rel (%p331) target = $region52
      $region51: #{pointnetv2_treg_forward.1} parent=47 // pred_region
        %vm334 = vcmask 15360
        %335 = vst.msk [vmem:[%s328] sm:$0xff] %vm334, 0.0
        %336 = vst.msk [vmem:[%s328 + $0x8] sm:$0xff] %vm334, 0.0
        %337 = vst.msk [vmem:[%s328 + $0x10] sm:$0xff] %vm334, 0.0
        %338 = vst.msk [vmem:[%s328 + $0x18] sm:$0xff] %vm334, 0.0
        %339 = vst.msk [vmem:[%s328 + $0x20] sm:$0xff] %vm334, 0.0
        %340 = vst.msk [vmem:[%s328 + $0x28] sm:$0xff] %vm334, 0.0
        %341 = vst.msk [vmem:[%s328 + $0x30] sm:$0xff] %vm334, 0.0
        %342 = vst.msk [vmem:[%s328 + $0x38] sm:$0xff] %vm334, 0.0
        %343 = vst.msk [vmem:[%s328 + $0x40] sm:$0xff] %vm334, 0.0
        %344 = vst.msk [vmem:[%s328 + $0x48] sm:$0xff] %vm334, 0.0
        %345 = vst.msk [vmem:[%s328 + $0x50] sm:$0xff] %vm334, 0.0
        %346 = vst.msk [vmem:[%s328 + $0x58] sm:$0xff] %vm334, 0.0
        %347 = vst.msk [vmem:[%s328 + $0x60] sm:$0xff] %vm334, 0.0
        %348 = vst.msk [vmem:[%s328 + $0x68] sm:$0xff] %vm334, 0.0
        %349 = vst.msk [vmem:[%s328 + $0x70] sm:$0xff] %vm334, 0.0
        %350 = vst.msk [vmem:[%s328 + $0x78] sm:$0xff] %vm334, 0.0
        %351 = vst.msk [vmem:[%s328 + $0x80] sm:$0xff] %vm334, 0.0
        %352 = vst.msk [vmem:[%s328 + $0x88] sm:$0xff] %vm334, 0.0
        %353 = vst.msk [vmem:[%s328 + $0x90] sm:$0xff] %vm334, 0.0
        %354 = vst.msk [vmem:[%s328 + $0x98] sm:$0xff] %vm334, 0.0
        %355 = vst.msk [vmem:[%s328 + $0xa0] sm:$0xff] %vm334, 0.0
        %356 = vst.msk [vmem:[%s328 + $0xa8] sm:$0xff] %vm334, 0.0
        %357 = vst.msk [vmem:[%s328 + $0xb0] sm:$0xff] %vm334, 0.0
        %358 = vst.msk [vmem:[%s328 + $0xb8] sm:$0xff] %vm334, 0.0
        %359 = vst.msk [vmem:[%s328 + $0xc0] sm:$0xff] %vm334, 0.0
        %360 = vst.msk [vmem:[%s328 + $0xc8] sm:$0xff] %vm334, 0.0
        %361 = vst.msk [vmem:[%s328 + $0xd0] sm:$0xff] %vm334, 0.0
        %362 = vst.msk [vmem:[%s328 + $0xd8] sm:$0xff] %vm334, 0.0
        %363 = vst.msk [vmem:[%s328 + $0xe0] sm:$0xff] %vm334, 0.0
        %364 = vst.msk [vmem:[%s328 + $0xe8] sm:$0xff] %vm334, 0.0
        %365 = vst.msk [vmem:[%s328 + $0xf0] sm:$0xff] %vm334, 0.0
        %366 = vst.msk [vmem:[%s328 + $0xf8] sm:$0xff] %vm334, 0.0
      $region52: #{pointnetv2_treg_forward.1} parent=47 // pred_fallthru
        _
      %v367 = vld [vmem:[%s2] sm:$0xff]
      %v368 = vld [vmem:[%s2 + $0x8] sm:$0xff]
      %v369 = vld [vmem:[%s2 + $0x10] sm:$0xff]
      %v370 = vld [vmem:[%s2 + $0x18] sm:$0xff]
      %v371 = vld [vmem:[%s2 + $0x20] sm:$0xff]
      %v372 = vld [vmem:[%s2 + $0x28] sm:$0xff]
      %v373 = vld [vmem:[%s2 + $0x30] sm:$0xff]
      %v374 = vld [vmem:[%s2 + $0x38] sm:$0xff]
      %v375 = vld [vmem:[%s4] sm:$0xff]
      %v376 = vld [vmem:[%s4 + $0x8] sm:$0xff]
      %v377 = vld [vmem:[%s4 + $0x10] sm:$0xff]
      %v378 = vld [vmem:[%s4 + $0x18] sm:$0xff]
      %v379 = vld [vmem:[%s4 + $0x20] sm:$0xff]
      %v380 = vld [vmem:[%s4 + $0x28] sm:$0xff]
      %v381 = vld [vmem:[%s4 + $0x30] sm:$0xff]
      %v382 = vld [vmem:[%s4 + $0x38] sm:$0xff]
      %v383 = vld [vmem:[%s4 + $0x40] sm:$0xff]
      %v384 = vld [vmem:[%s4 + $0x48] sm:$0xff]
      %v385 = vld [vmem:[%s4 + $0x50] sm:$0xff]
      %v386 = vld [vmem:[%s4 + $0x58] sm:$0xff]
      %v387 = vld [vmem:[%s4 + $0x60] sm:$0xff]
      %v388 = vld [vmem:[%s4 + $0x68] sm:$0xff]
      %v389 = vld [vmem:[%s4 + $0x70] sm:$0xff]
      %v390 = vld [vmem:[%s4 + $0x78] sm:$0xff]
      %v391 = vld [vmem:[%s6] sm:$0xff]
      %v392 = vld [vmem:[%s6 + $0x8] sm:$0xff]
      %v393 = vld [vmem:[%s6 + $0x10] sm:$0xff]
      %v394 = vld [vmem:[%s6 + $0x18] sm:$0xff]
      %v395 = vld [vmem:[%s6 + $0x20] sm:$0xff]
      %v396 = vld [vmem:[%s6 + $0x28] sm:$0xff]
      %v397 = vld [vmem:[%s6 + $0x30] sm:$0xff]
      %v398 = vld [vmem:[%s6 + $0x38] sm:$0xff]
      %v399 = vld [vmem:[%s6 + $0x40] sm:$0xff]
      %v400 = vld [vmem:[%s6 + $0x48] sm:$0xff]
      %v401 = vld [vmem:[%s6 + $0x50] sm:$0xff]
      %v402 = vld [vmem:[%s6 + $0x58] sm:$0xff]
      %v403 = vld [vmem:[%s6 + $0x60] sm:$0xff]
      %v404 = vld [vmem:[%s6 + $0x68] sm:$0xff]
      %v405 = vld [vmem:[%s6 + $0x70] sm:$0xff]
      %v406 = vld [vmem:[%s6 + $0x78] sm:$0xff]
      %v407 = vld [vmem:[%s6 + $0x80] sm:$0xff]
      %v408 = vld [vmem:[%s6 + $0x88] sm:$0xff]
      %v409 = vld [vmem:[%s6 + $0x90] sm:$0xff]
      %v410 = vld [vmem:[%s6 + $0x98] sm:$0xff]
      %v411 = vld [vmem:[%s6 + $0xa0] sm:$0xff]
      %v412 = vld [vmem:[%s6 + $0xa8] sm:$0xff]
      %v413 = vld [vmem:[%s6 + $0xb0] sm:$0xff]
      %v414 = vld [vmem:[%s6 + $0xb8] sm:$0xff]
      %v415 = vld [vmem:[%s6 + $0xc0] sm:$0xff]
      %v416 = vld [vmem:[%s6 + $0xc8] sm:$0xff]
      %v417 = vld [vmem:[%s6 + $0xd0] sm:$0xff]
      %v418 = vld [vmem:[%s6 + $0xd8] sm:$0xff]
      %v419 = vld [vmem:[%s6 + $0xe0] sm:$0xff]
      %v420 = vld [vmem:[%s6 + $0xe8] sm:$0xff]
      %v421 = vld [vmem:[%s6 + $0xf0] sm:$0xff]
      %v422 = vld [vmem:[%s6 + $0xf8] sm:$0xff]
      %v423 = vld [vmem:[%s3] sm:$0xf]
      %v424 = vld [vmem:[%s3 + $0x4] sm:$0xf]
      %v425 = vld [vmem:[%s3 + $0x8] sm:$0xf]
      %v426 = vld [vmem:[%s3 + $0xc] sm:$0xf]
      %v427 = vld [vmem:[%s3 + $0x10] sm:$0xf]
      %v428 = vld [vmem:[%s3 + $0x14] sm:$0xf]
      %v429 = vld [vmem:[%s3 + $0x18] sm:$0xf]
      %v430 = vld [vmem:[%s3 + $0x1c] sm:$0xf]
      %v431 = vld [vmem:[%s3 + $0x20] sm:$0xf]
      %v432 = vld [vmem:[%s3 + $0x24] sm:$0xf]
      %v433 = vld [vmem:[%s3 + $0x28] sm:$0xf]
      %v434 = vld [vmem:[%s3 + $0x2c] sm:$0xf]
      %v435 = vld [vmem:[%s3 + $0x30] sm:$0xf]
      %v436 = vld [vmem:[%s3 + $0x34] sm:$0xf]
      %v437 = vld [vmem:[%s3 + $0x38] sm:$0xf]
      %v438 = vld [vmem:[%s3 + $0x3c] sm:$0xf]
      %v439 = vld [vmem:[%s5] sm:$0xf]
      %v440 = vld [vmem:[%s5 + $0x4] sm:$0xf]
      %v441 = vld [vmem:[%s5 + $0x8] sm:$0xf]
      %v442 = vld [vmem:[%s5 + $0xc] sm:$0xf]
      %v443 = vld [vmem:[%s5 + $0x10] sm:$0xf]
      %v444 = vld [vmem:[%s5 + $0x14] sm:$0xf]
      %v445 = vld [vmem:[%s5 + $0x18] sm:$0xf]
      %v446 = vld [vmem:[%s5 + $0x1c] sm:$0xf]
      %v447 = vld [vmem:[%s5 + $0x20] sm:$0xf]
      %v448 = vld [vmem:[%s5 + $0x24] sm:$0xf]
      %v449 = vld [vmem:[%s5 + $0x28] sm:$0xf]
      %v450 = vld [vmem:[%s5 + $0x2c] sm:$0xf]
      %v451 = vld [vmem:[%s5 + $0x30] sm:$0xf]
      %v452 = vld [vmem:[%s5 + $0x34] sm:$0xf]
      %v453 = vld [vmem:[%s5 + $0x38] sm:$0xf]
      %v454 = vld [vmem:[%s5 + $0x3c] sm:$0xf]
      %v455 = vld [vmem:[%s5 + $0x40] sm:$0xf]
      %v456 = vld [vmem:[%s5 + $0x44] sm:$0xf]
      %v457 = vld [vmem:[%s5 + $0x48] sm:$0xf]
      %v458 = vld [vmem:[%s5 + $0x4c] sm:$0xf]
      %v459 = vld [vmem:[%s5 + $0x50] sm:$0xf]
      %v460 = vld [vmem:[%s5 + $0x54] sm:$0xf]
      %v461 = vld [vmem:[%s5 + $0x58] sm:$0xf]
      %v462 = vld [vmem:[%s5 + $0x5c] sm:$0xf]
      %v463 = vld [vmem:[%s5 + $0x60] sm:$0xf]
      %v464 = vld [vmem:[%s5 + $0x64] sm:$0xf]
      %v465 = vld [vmem:[%s5 + $0x68] sm:$0xf]
      %v466 = vld [vmem:[%s5 + $0x6c] sm:$0xf]
      %v467 = vld [vmem:[%s5 + $0x70] sm:$0xf]
      %v468 = vld [vmem:[%s5 + $0x74] sm:$0xf]
      %v469 = vld [vmem:[%s5 + $0x78] sm:$0xf]
      %v470 = vld [vmem:[%s5 + $0x7c] sm:$0xf]
      %v471 = vld [vmem:[%s315] sm:$0x3]
      %v472 = vld [vmem:[%s322] sm:$0xf]
      %v473 = vld [vmem:[%s322 + $0x4] sm:$0xf]
      %v474 = vld [vmem:[%s322 + $0x8] sm:$0xf]
      %v475 = vld [vmem:[%s322 + $0xc] sm:$0xf]
      %v476 = vld [vmem:[%s322 + $0x10] sm:$0xf]
      %v477 = vld [vmem:[%s322 + $0x14] sm:$0xf]
      %v478 = vld [vmem:[%s322 + $0x18] sm:$0xf]
      %v479 = vld [vmem:[%s322 + $0x1c] sm:$0xf]
      %481 = vset.pattern.permute.xlu0 0
      %482 = vperm.xlu0 %481, %v367
      %v483 = vpop.permute.xlu0 %482
      %486 = vset.pattern.permute.xlu0 0
      %487 = vperm.xlu0 %486, %v368
      %v488 = vpop.permute.xlu0 %487
      %491 = vset.pattern.permute.xlu0 0
      %492 = vperm.xlu0 %491, %v369
      %v493 = vpop.permute.xlu0 %492
      %496 = vset.pattern.permute.xlu0 0
      %497 = vperm.xlu0 %496, %v370
      %v498 = vpop.permute.xlu0 %497
      %501 = vset.pattern.permute.xlu0 0
      %502 = vperm.xlu0 %501, %v371
      %v503 = vpop.permute.xlu0 %502
      %506 = vset.pattern.permute.xlu0 0
      %507 = vperm.xlu0 %506, %v372
      %v508 = vpop.permute.xlu0 %507
      %511 = vset.pattern.permute.xlu0 0
      %512 = vperm.xlu0 %511, %v373
      %v513 = vpop.permute.xlu0 %512
      %516 = vset.pattern.permute.xlu0 0
      %517 = vperm.xlu0 %516, %v374
      %v518 = vpop.permute.xlu0 %517
      %v528 = vunpack.c.l.b16 %v472
      %v529 = vunpack.c.l.b16 %v473
      %v530 = vunpack.c.l.b16 %v474
      %v531 = vunpack.c.l.b16 %v475
      %v532 = vunpack.c.l.b16 %v476
      %v533 = vunpack.c.l.b16 %v477
      %v534 = vunpack.c.l.b16 %v478
      %v535 = vunpack.c.l.b16 %v479
      %v536 = vpack.c.b16 %v529, %v528
      %v537 = vpack.c.b16 %v531, %v530
      %v538 = vpack.c.b16 %v533, %v532
      %v539 = vpack.c.b16 %v535, %v534
      %vm540 = vcmask 23552
      %v542 = vsel %vm540, %v536, 0
      %v545 = vsel %vm540, %v537, 0
      %v548 = vsel %vm540, %v538, 0
      %v551 = vsel %vm540, %v539, 0
      %vm553 = vcmask 1040384
      %vm554 = vcmask 1041408
      %v555 = vsel %vm553, 4294967295, 65535
      %v556 = vsel %vm554, %v555, 0
      %v558 = vand.u32 %v471, %v556
      %560 = vmatprep.subr.bf16.mxu0 0
      %561 = vmatpush1.bf16.msra.mxu0 %v558
      %562 = vmatprep.subr.bf16.mxu0 0
      %563 = vmatpush1.bf16.msra.mxu0 0
      %564 = vmatprep.subr.bf16.mxu0 0
      %565 = vmatpush1.bf16.msra.mxu0 0
      %566 = vmatprep.subr.bf16.mxu0 0
      %567 = vmatpush1.bf16.msra.mxu0 0
      %568 = vmatprep.subr.bf16.mxu0 0
      %569 = vmatpush1.bf16.msra.mxu0 0
      %570 = vmatprep.subr.bf16.mxu0 0
      %571 = vmatpush1.bf16.msra.mxu0 0
      %572 = vmatprep.subr.bf16.mxu0 0
      %573 = vmatpush1.bf16.msra.mxu0 0
      %574 = vmatprep.subr.bf16.mxu0 0
      %575 = vmatpush1.bf16.msra.mxu0 0
      %576 = vmatprep.subr.bf16.mxu0 0
      %577 = vmatpush1.bf16.msra.mxu0 0
      %578 = vmatprep.subr.bf16.mxu0 0
      %579 = vmatpush1.bf16.msra.mxu0 0
      %580 = vmatprep.subr.bf16.mxu0 0
      %581 = vmatpush1.bf16.msra.mxu0 0
      %582 = vmatprep.subr.bf16.mxu0 0
      %583 = vmatpush1.bf16.msra.mxu0 0
      %584 = vmatprep.subr.bf16.mxu0 0
      %585 = vmatpush1.bf16.msra.mxu0 0
      %586 = vmatprep.subr.bf16.mxu0 0
      %587 = vmatpush1.bf16.msra.mxu0 0
      %588 = vmatprep.subr.bf16.mxu0 0
      %589 = vmatpush1.bf16.msra.mxu0 0
      %590 = vmatprep.subr.bf16.mxu0 0
      %591 = vmatpush1.bf16.msra.mxu0 0
      %592 = vmatprep.mubr.bf16.mxu0 0
      %593 = vmatmul.mubr.bf16.gmra.mrb[0].mxu0 %v542
      %v594 = vpop.f32.mrb[0].mxu0
      %v595 = vadd.f32 %v483, %v594
      %v596 = vpop.f32.mrb[0].mxu0
      %v597 = vpop.f32.mrb[0].mxu0
      %v598 = vadd.f32 %v488, %v597
      %v599 = vpop.f32.mrb[0].mxu0
      %600 = vmatprep.mubr.bf16.mxu0 0
      %601 = vmatmul.mubr.bf16.gmra.mrb[0].mxu0 %v545
      %v602 = vpop.f32.mrb[0].mxu0
      %v603 = vadd.f32 %v493, %v602
      %v604 = vpop.f32.mrb[0].mxu0
      %v605 = vpop.f32.mrb[0].mxu0
      %v606 = vadd.f32 %v498, %v605
      %v607 = vpop.f32.mrb[0].mxu0
      %608 = vmatprep.mubr.bf16.mxu0 0
      %609 = vmatmul.mubr.bf16.gmra.mrb[0].mxu0 %v548
      %v610 = vpop.f32.mrb[0].mxu0
      %v611 = vadd.f32 %v503, %v610
      %v612 = vpop.f32.mrb[0].mxu0
      %v613 = vpop.f32.mrb[0].mxu0
      %v614 = vadd.f32 %v508, %v613
      %v615 = vpop.f32.mrb[0].mxu0
      %616 = vmatprep.mubr.bf16.mxu0 0
      %617 = vmatmul.mubr.bf16.gmra.mrb[0].mxu0 %v551
      %v618 = vpop.f32.mrb[0].mxu0
      %v619 = vadd.f32 %v513, %v618
      %v620 = vpop.f32.mrb[0].mxu0
      %v621 = vpop.f32.mrb[0].mxu0
      %v622 = vadd.f32 %v518, %v621
      %v623 = vpop.f32.mrb[0].mxu0
      %624 = vdwg.mxu0
      %v625 = vmax.f32 %v595, 0.0
      %v626 = vmax.f32 %v598, 0.0
      %v627 = vmax.f32 %v603, 0.0
      %v628 = vmax.f32 %v606, 0.0
      %v629 = vmax.f32 %v611, 0.0
      %v630 = vmax.f32 %v614, 0.0
      %v631 = vmax.f32 %v619, 0.0
      %v632 = vmax.f32 %v622, 0.0
      %v633 = vpack.c.bf16 %v626, %v625
      %v634 = vpack.c.bf16 %v628, %v627
      %v635 = vpack.c.bf16 %v630, %v629
      %v636 = vpack.c.bf16 %v632, %v631
      %638 = vset.pattern.permute.xlu0 0
      %639 = vperm.xlu0 %638, %v375
      %v640 = vpop.permute.xlu0 %639
      %643 = vset.pattern.permute.xlu0 0
      %644 = vperm.xlu0 %643, %v376
      %v645 = vpop.permute.xlu0 %644
      %648 = vset.pattern.permute.xlu0 0
      %649 = vperm.xlu0 %648, %v377
      %v650 = vpop.permute.xlu0 %649
      %653 = vset.pattern.permute.xlu0 0
      %654 = vperm.xlu0 %653, %v378
      %v655 = vpop.permute.xlu0 %654
      %658 = vset.pattern.permute.xlu0 0
      %659 = vperm.xlu0 %658, %v379
      %v660 = vpop.permute.xlu0 %659
      %663 = vset.pattern.permute.xlu0 0
      %664 = vperm.xlu0 %663, %v380
      %v665 = vpop.permute.xlu0 %664
      %668 = vset.pattern.permute.xlu0 0
      %669 = vperm.xlu0 %668, %v381
      %v670 = vpop.permute.xlu0 %669
      %673 = vset.pattern.permute.xlu0 0
      %674 = vperm.xlu0 %673, %v382
      %v675 = vpop.permute.xlu0 %674
      %678 = vset.pattern.permute.xlu0 0
      %679 = vperm.xlu0 %678, %v383
      %v680 = vpop.permute.xlu0 %679
      %683 = vset.pattern.permute.xlu0 0
      %684 = vperm.xlu0 %683, %v384
      %v685 = vpop.permute.xlu0 %684
      %688 = vset.pattern.permute.xlu0 0
      %689 = vperm.xlu0 %688, %v385
      %v690 = vpop.permute.xlu0 %689
      %693 = vset.pattern.permute.xlu0 0
      %694 = vperm.xlu0 %693, %v386
      %v695 = vpop.permute.xlu0 %694
      %698 = vset.pattern.permute.xlu0 0
      %699 = vperm.xlu0 %698, %v387
      %v700 = vpop.permute.xlu0 %699
      %703 = vset.pattern.permute.xlu0 0
      %704 = vperm.xlu0 %703, %v388
      %v705 = vpop.permute.xlu0 %704
      %708 = vset.pattern.permute.xlu0 0
      %709 = vperm.xlu0 %708, %v389
      %v710 = vpop.permute.xlu0 %709
      %713 = vset.pattern.permute.xlu0 0
      %714 = vperm.xlu0 %713, %v390
      %v715 = vpop.permute.xlu0 %714
      %v733 = vunpack.c.l.b16 %v423
      %v734 = vunpack.c.l.b16 %v424
      %v735 = vunpack.c.l.b16 %v425
      %v736 = vunpack.c.l.b16 %v426
      %v737 = vunpack.c.l.b16 %v427
      %v738 = vunpack.c.l.b16 %v428
      %v739 = vunpack.c.l.b16 %v429
      %v740 = vunpack.c.l.b16 %v430
      %v741 = vunpack.c.l.b16 %v431
      %v742 = vunpack.c.l.b16 %v432
      %v743 = vunpack.c.l.b16 %v433
      %v744 = vunpack.c.l.b16 %v434
      %v745 = vunpack.c.l.b16 %v435
      %v746 = vunpack.c.l.b16 %v436
      %v747 = vunpack.c.l.b16 %v437
      %v748 = vunpack.c.l.b16 %v438
      %v749 = vpack.c.b16 %v734, %v733
      %v750 = vpack.c.b16 %v736, %v735
      %v751 = vpack.c.b16 %v738, %v737
      %v752 = vpack.c.b16 %v740, %v739
      %v753 = vpack.c.b16 %v742, %v741
      %v754 = vpack.c.b16 %v744, %v743
      %v755 = vpack.c.b16 %v746, %v745
      %v756 = vpack.c.b16 %v748, %v747
      %vm757 = vcmask 523264
      %v759 = vsel %vm757, %v749, 0
      %v762 = vsel %vm757, %v750, 0
      %v765 = vsel %vm757, %v751, 0
      %v768 = vsel %vm757, %v752, 0
      %v771 = vsel %vm757, %v753, 0
      %v774 = vsel %vm757, %v754, 0
      %v777 = vsel %vm757, %v755, 0
      %v780 = vsel %vm757, %v756, 0
      %782 = vmatprep.subr.bf16.mxu0 0
      %783 = vmatpush1.bf16.msra.mxu0 %v633
      %784 = vmatprep.subr.bf16.mxu0 0
      %785 = vmatpush1.bf16.msra.mxu0 %v634
      %786 = vmatprep.subr.bf16.mxu0 0
      %787 = vmatpush1.bf16.msra.mxu0 %v635
      %788 = vmatprep.subr.bf16.mxu0 0
      %789 = vmatpush1.bf16.msra.mxu0 %v636
      %790 = vmatprep.subr.bf16.mxu0 0
      %791 = vmatpush1.bf16.msra.mxu0 0
      %792 = vmatprep.subr.bf16.mxu0 0
      %793 = vmatpush1.bf16.msra.mxu0 0
      %794 = vmatprep.subr.bf16.mxu0 0
      %795 = vmatpush1.bf16.msra.mxu0 0
      %796 = vmatprep.subr.bf16.mxu0 0
      %797 = vmatpush1.bf16.msra.mxu0 0
      %798 = vmatprep.subr.bf16.mxu0 0
      %799 = vmatpush1.bf16.msra.mxu0 0
      %800 = vmatprep.subr.bf16.mxu0 0
      %801 = vmatpush1.bf16.msra.mxu0 0
      %802 = vmatprep.subr.bf16.mxu0 0
      %803 = vmatpush1.bf16.msra.mxu0 0
      %804 = vmatprep.subr.bf16.mxu0 0
      %805 = vmatpush1.bf16.msra.mxu0 0
      %806 = vmatprep.subr.bf16.mxu0 0
      %807 = vmatpush1.bf16.msra.mxu0 0
      %808 = vmatprep.subr.bf16.mxu0 0
      %809 = vmatpush1.bf16.msra.mxu0 0
      %810 = vmatprep.subr.bf16.mxu0 0
      %811 = vmatpush1.bf16.msra.mxu0 0
      %812 = vmatprep.subr.bf16.mxu0 0
      %813 = vmatpush1.bf16.msra.mxu0 0
      %814 = vmatprep.mubr.bf16.mxu0 0
      %815 = vmatmul.mubr.bf16.gmra.mrb[0].mxu0 %v759
      %v816 = vpop.f32.mrb[0].mxu0
      %v817 = vadd.f32 %v640, %v816
      %v818 = vpop.f32.mrb[0].mxu0
      %v819 = vpop.f32.mrb[0].mxu0
      %v820 = vadd.f32 %v645, %v819
      %v821 = vpop.f32.mrb[0].mxu0
      %822 = vmatprep.mubr.bf16.mxu0 0
      %823 = vmatmul.mubr.bf16.gmra.mrb[0].mxu0 %v762
      %v824 = vpop.f32.mrb[0].mxu0
      %v825 = vadd.f32 %v650, %v824
      %v826 = vpop.f32.mrb[0].mxu0
      %v827 = vpop.f32.mrb[0].mxu0
      %v828 = vadd.f32 %v655, %v827
      %v829 = vpop.f32.mrb[0].mxu0
      %830 = vmatprep.mubr.bf16.mxu0 0
      %831 = vmatmul.mubr.bf16.gmra.mrb[0].mxu0 %v765
      %v832 = vpop.f32.mrb[0].mxu0
      %v833 = vadd.f32 %v660, %v832
      %v834 = vpop.f32.mrb[0].mxu0
      %v835 = vpop.f32.mrb[0].mxu0
      %v836 = vadd.f32 %v665, %v835
      %v837 = vpop.f32.mrb[0].mxu0
      %838 = vmatprep.mubr.bf16.mxu0 0
      %839 = vmatmul.mubr.bf16.gmra.mrb[0].mxu0 %v768
      %v840 = vpop.f32.mrb[0].mxu0
      %v841 = vadd.f32 %v670, %v840
      %v842 = vpop.f32.mrb[0].mxu0
      %v843 = vpop.f32.mrb[0].mxu0
      %v844 = vadd.f32 %v675, %v843
      %v845 = vpop.f32.mrb[0].mxu0
      %846 = vmatprep.mubr.bf16.mxu0 0
      %847 = vmatmul.mubr.bf16.gmra.mrb[0].mxu0 %v771
      %v848 = vpop.f32.mrb[0].mxu0
      %v849 = vadd.f32 %v680, %v848
      %v850 = vpop.f32.mrb[0].mxu0
      %v851 = vpop.f32.mrb[0].mxu0
      %v852 = vadd.f32 %v685, %v851
      %v853 = vpop.f32.mrb[0].mxu0
      %854 = vmatprep.mubr.bf16.mxu0 0
      %855 = vmatmul.mubr.bf16.gmra.mrb[0].mxu0 %v774
      %v856 = vpop.f32.mrb[0].mxu0
      %v857 = vadd.f32 %v690, %v856
      %v858 = vpop.f32.mrb[0].mxu0
      %v859 = vpop.f32.mrb[0].mxu0
      %v860 = vadd.f32 %v695, %v859
      %v861 = vpop.f32.mrb[0].mxu0
      %862 = vmatprep.mubr.bf16.mxu0 0
      %863 = vmatmul.mubr.bf16.gmra.mrb[0].mxu0 %v777
      %v864 = vpop.f32.mrb[0].mxu0
      %v865 = vadd.f32 %v700, %v864
      %v866 = vpop.f32.mrb[0].mxu0
      %v867 = vpop.f32.mrb[0].mxu0
      %v868 = vadd.f32 %v705, %v867
      %v869 = vpop.f32.mrb[0].mxu0
      %870 = vmatprep.mubr.bf16.mxu0 0
      %871 = vmatmul.mubr.bf16.gmra.mrb[0].mxu0 %v780
      %v872 = vpop.f32.mrb[0].mxu0
      %v873 = vadd.f32 %v710, %v872
      %v874 = vpop.f32.mrb[0].mxu0
      %v875 = vpop.f32.mrb[0].mxu0
      %v876 = vadd.f32 %v715, %v875
      %v877 = vpop.f32.mrb[0].mxu0
      %878 = vdwg.mxu0
      %v879 = vmax.f32 %v817, 0.0
      %v880 = vmax.f32 %v820, 0.0
      %v881 = vmax.f32 %v825, 0.0
      %v882 = vmax.f32 %v828, 0.0
      %v883 = vmax.f32 %v833, 0.0
      %v884 = vmax.f32 %v836, 0.0
      %v885 = vmax.f32 %v841, 0.0
      %v886 = vmax.f32 %v844, 0.0
      %v887 = vmax.f32 %v849, 0.0
      %v888 = vmax.f32 %v852, 0.0
      %v889 = vmax.f32 %v857, 0.0
      %v890 = vmax.f32 %v860, 0.0
      %v891 = vmax.f32 %v865, 0.0
      %v892 = vmax.f32 %v868, 0.0
      %v893 = vmax.f32 %v873, 0.0
      %v894 = vmax.f32 %v876, 0.0
      %v895 = vpack.c.bf16 %v880, %v879
      %v896 = vpack.c.bf16 %v882, %v881
      %v897 = vpack.c.bf16 %v884, %v883
      %v898 = vpack.c.bf16 %v886, %v885
      %v899 = vpack.c.bf16 %v888, %v887
      %v900 = vpack.c.bf16 %v890, %v889
      %v901 = vpack.c.bf16 %v892, %v891
      %v902 = vpack.c.bf16 %v894, %v893
      %904 = vset.pattern.permute.xlu0 0
      %905 = vperm.xlu0 %904, %v391
      %v906 = vpop.permute.xlu0 %905
      %909 = vset.pattern.permute.xlu0 0
      %910 = vperm.xlu0 %909, %v392
      %v911 = vpop.permute.xlu0 %910
      %914 = vset.pattern.permute.xlu0 0
      %915 = vperm.xlu0 %914, %v393
      %v916 = vpop.permute.xlu0 %915
      %919 = vset.pattern.permute.xlu0 0
      %920 = vperm.xlu0 %919, %v394
      %v921 = vpop.permute.xlu0 %920
      %924 = vset.pattern.permute.xlu0 0
      %925 = vperm.xlu0 %924, %v395
      %v926 = vpop.permute.xlu0 %925
      %929 = vset.pattern.permute.xlu0 0
      %930 = vperm.xlu0 %929, %v396
      %v931 = vpop.permute.xlu0 %930
      %934 = vset.pattern.permute.xlu0 0
      %935 = vperm.xlu0 %934, %v397
      %v936 = vpop.permute.xlu0 %935
      %939 = vset.pattern.permute.xlu0 0
      %940 = vperm.xlu0 %939, %v398
      %v941 = vpop.permute.xlu0 %940
      %944 = vset.pattern.permute.xlu0 0
      %945 = vperm.xlu0 %944, %v399
      %v946 = vpop.permute.xlu0 %945
      %949 = vset.pattern.permute.xlu0 0
      %950 = vperm.xlu0 %949, %v400
      %v951 = vpop.permute.xlu0 %950
      %954 = vset.pattern.permute.xlu0 0
      %955 = vperm.xlu0 %954, %v401
      %v956 = vpop.permute.xlu0 %955
      %959 = vset.pattern.permute.xlu0 0
      %960 = vperm.xlu0 %959, %v402
      %v961 = vpop.permute.xlu0 %960
      %964 = vset.pattern.permute.xlu0 0
      %965 = vperm.xlu0 %964, %v403
      %v966 = vpop.permute.xlu0 %965
      %969 = vset.pattern.permute.xlu0 0
      %970 = vperm.xlu0 %969, %v404
      %v971 = vpop.permute.xlu0 %970
      %974 = vset.pattern.permute.xlu0 0
      %975 = vperm.xlu0 %974, %v405
      %v976 = vpop.permute.xlu0 %975
      %979 = vset.pattern.permute.xlu0 0
      %980 = vperm.xlu0 %979, %v406
      %v981 = vpop.permute.xlu0 %980
      %984 = vset.pattern.permute.xlu0 0
      %985 = vperm.xlu0 %984, %v407
      %v986 = vpop.permute.xlu0 %985
      %989 = vset.pattern.permute.xlu0 0
      %990 = vperm.xlu0 %989, %v408
      %v991 = vpop.permute.xlu0 %990
      %994 = vset.pattern.permute.xlu0 0
      %995 = vperm.xlu0 %994, %v409
      %v996 = vpop.permute.xlu0 %995
      %999 = vset.pattern.permute.xlu0 0
      %1000 = vperm.xlu0 %999, %v410
      %v1001 = vpop.permute.xlu0 %1000
      %1004 = vset.pattern.permute.xlu0 0
      %1005 = vperm.xlu0 %1004, %v411
      %v1006 = vpop.permute.xlu0 %1005
      %1009 = vset.pattern.permute.xlu0 0
      %1010 = vperm.xlu0 %1009, %v412
      %v1011 = vpop.permute.xlu0 %1010
      %1014 = vset.pattern.permute.xlu0 0
      %1015 = vperm.xlu0 %1014, %v413
      %v1016 = vpop.permute.xlu0 %1015
      %1019 = vset.pattern.permute.xlu0 0
      %1020 = vperm.xlu0 %1019, %v414
      %v1021 = vpop.permute.xlu0 %1020
      %1024 = vset.pattern.permute.xlu0 0
      %1025 = vperm.xlu0 %1024, %v415
      %v1026 = vpop.permute.xlu0 %1025
      %1029 = vset.pattern.permute.xlu0 0
      %1030 = vperm.xlu0 %1029, %v416
      %v1031 = vpop.permute.xlu0 %1030
      %1034 = vset.pattern.permute.xlu0 0
      %1035 = vperm.xlu0 %1034, %v417
      %v1036 = vpop.permute.xlu0 %1035
      %1039 = vset.pattern.permute.xlu0 0
      %1040 = vperm.xlu0 %1039, %v418
      %v1041 = vpop.permute.xlu0 %1040
      %1044 = vset.pattern.permute.xlu0 0
      %1045 = vperm.xlu0 %1044, %v419
      %v1046 = vpop.permute.xlu0 %1045
      %1049 = vset.pattern.permute.xlu0 0
      %1050 = vperm.xlu0 %1049, %v420
      %v1051 = vpop.permute.xlu0 %1050
      %1054 = vset.pattern.permute.xlu0 0
      %1055 = vperm.xlu0 %1054, %v421
      %v1056 = vpop.permute.xlu0 %1055
      %1059 = vset.pattern.permute.xlu0 0
      %1060 = vperm.xlu0 %1059, %v422
      %v1061 = vpop.permute.xlu0 %1060
      %v1095 = vunpack.c.l.b16 %v439
      %v1096 = vunpack.c.l.b16 %v440
      %v1097 = vunpack.c.l.b16 %v441
      %v1098 = vunpack.c.l.b16 %v442
      %v1099 = vunpack.c.l.b16 %v443
      %v1100 = vunpack.c.l.b16 %v444
      %v1101 = vunpack.c.l.b16 %v445
      %v1102 = vunpack.c.l.b16 %v446
      %v1103 = vunpack.c.l.b16 %v447
      %v1104 = vunpack.c.l.b16 %v448
      %v1105 = vunpack.c.l.b16 %v449
      %v1106 = vunpack.c.l.b16 %v450
      %v1107 = vunpack.c.l.b16 %v451
      %v1108 = vunpack.c.l.b16 %v452
      %v1109 = vunpack.c.l.b16 %v453
      %v1110 = vunpack.c.l.b16 %v454
      %v1111 = vunpack.c.l.b16 %v455
      %v1112 = vunpack.c.l.b16 %v456
      %v1113 = vunpack.c.l.b16 %v457
      %v1114 = vunpack.c.l.b16 %v458
      %v1115 = vunpack.c.l.b16 %v459
      %v1116 = vunpack.c.l.b16 %v460
      %v1117 = vunpack.c.l.b16 %v461
      %v1118 = vunpack.c.l.b16 %v462
      %v1119 = vunpack.c.l.b16 %v463
      %v1120 = vunpack.c.l.b16 %v464
      %v1121 = vunpack.c.l.b16 %v465
      %v1122 = vunpack.c.l.b16 %v466
      %v1123 = vunpack.c.l.b16 %v467
      %v1124 = vunpack.c.l.b16 %v468
      %v1125 = vunpack.c.l.b16 %v469
      %v1126 = vunpack.c.l.b16 %v470
      %v1127 = vpack.c.b16 %v1096, %v1095
      %v1128 = vpack.c.b16 %v1098, %v1097
      %v1129 = vpack.c.b16 %v1100, %v1099
      %v1130 = vpack.c.b16 %v1102, %v1101
      %v1131 = vpack.c.b16 %v1104, %v1103
      %v1132 = vpack.c.b16 %v1106, %v1105
      %v1133 = vpack.c.b16 %v1108, %v1107
      %v1134 = vpack.c.b16 %v1110, %v1109
      %v1135 = vpack.c.b16 %v1112, %v1111
      %v1136 = vpack.c.b16 %v1114, %v1113
      %v1137 = vpack.c.b16 %v1116, %v1115
      %v1138 = vpack.c.b16 %v1118, %v1117
      %v1139 = vpack.c.b16 %v1120, %v1119
      %v1140 = vpack.c.b16 %v1122, %v1121
      %v1141 = vpack.c.b16 %v1124, %v1123
      %v1142 = vpack.c.b16 %v1126, %v1125
      %1159 = vmatprep.subr.bf16.mxu0 0
      %1160 = vmatpush1.bf16.msra.mxu0 %v895
      %1161 = vmatprep.subr.bf16.mxu0 0
      %1162 = vmatpush1.bf16.msra.mxu0 %v896
      %1163 = vmatprep.subr.bf16.mxu0 0
      %1164 = vmatpush1.bf16.msra.mxu0 %v897
      %1165 = vmatprep.subr.bf16.mxu0 0
      %1166 = vmatpush1.bf16.msra.mxu0 %v898
      %1167 = vmatprep.subr.bf16.mxu0 0
      %1168 = vmatpush1.bf16.msra.mxu0 %v899
      %1169 = vmatprep.subr.bf16.mxu0 0
      %1170 = vmatpush1.bf16.msra.mxu0 %v900
      %1171 = vmatprep.subr.bf16.mxu0 0
      %1172 = vmatpush1.bf16.msra.mxu0 %v901
      %1173 = vmatprep.subr.bf16.mxu0 0
      %1174 = vmatpush1.bf16.msra.mxu0 %v902
      %1175 = vmatprep.subr.bf16.mxu0 0
      %1176 = vmatpush1.bf16.msra.mxu0 0
      %1177 = vmatprep.subr.bf16.mxu0 0
      %1178 = vmatpush1.bf16.msra.mxu0 0
      %1179 = vmatprep.subr.bf16.mxu0 0
      %1180 = vmatpush1.bf16.msra.mxu0 0
      %1181 = vmatprep.subr.bf16.mxu0 0
      %1182 = vmatpush1.bf16.msra.mxu0 0
      %1183 = vmatprep.subr.bf16.mxu0 0
      %1184 = vmatpush1.bf16.msra.mxu0 0
      %1185 = vmatprep.subr.bf16.mxu0 0
      %1186 = vmatpush1.bf16.msra.mxu0 0
      %1187 = vmatprep.subr.bf16.mxu0 0
      %1188 = vmatpush1.bf16.msra.mxu0 0
      %1189 = vmatprep.subr.bf16.mxu0 0
      %1190 = vmatpush1.bf16.msra.mxu0 0
      %1191 = vmatprep.mubr.bf16.mxu0 0
      %1192 = vmatmul.mubr.bf16.gmra.mrb[0].mxu0 %v1127
      %v1193 = vpop.f32.mrb[0].mxu0
      %v1194 = vadd.f32 %v906, %v1193
      %v1195 = vpop.f32.mrb[0].mxu0
      %v1196 = vpop.f32.mrb[0].mxu0
      %v1197 = vadd.f32 %v911, %v1196
      %v1198 = vpop.f32.mrb[0].mxu0
      %1199 = vmatprep.mubr.bf16.mxu0 0
      %1200 = vmatmul.mubr.bf16.gmra.mrb[0].mxu0 %v1128
      %v1201 = vpop.f32.mrb[0].mxu0
      %v1202 = vadd.f32 %v916, %v1201
      %v1203 = vpop.f32.mrb[0].mxu0
      %v1204 = vpop.f32.mrb[0].mxu0
      %v1205 = vadd.f32 %v921, %v1204
      %v1206 = vpop.f32.mrb[0].mxu0
      %1207 = vmatprep.mubr.bf16.mxu0 0
      %1208 = vmatmul.mubr.bf16.gmra.mrb[0].mxu0 %v1129
      %v1209 = vpop.f32.mrb[0].mxu0
      %v1210 = vadd.f32 %v926, %v1209
      %v1211 = vpop.f32.mrb[0].mxu0
      %v1212 = vpop.f32.mrb[0].mxu0
      %v1213 = vadd.f32 %v931, %v1212
      %v1214 = vpop.f32.mrb[0].mxu0
      %1215 = vmatprep.mubr.bf16.mxu0 0
      %1216 = vmatmul.mubr.bf16.gmra.mrb[0].mxu0 %v1130
      %v1217 = vpop.f32.mrb[0].mxu0
      %v1218 = vadd.f32 %v936, %v1217
      %v1219 = vpop.f32.mrb[0].mxu0
      %v1220 = vpop.f32.mrb[0].mxu0
      %v1221 = vadd.f32 %v941, %v1220
      %v1222 = vpop.f32.mrb[0].mxu0
      %1223 = vmatprep.mubr.bf16.mxu0 0
      %1224 = vmatmul.mubr.bf16.gmra.mrb[0].mxu0 %v1131
      %v1225 = vpop.f32.mrb[0].mxu0
      %v1226 = vadd.f32 %v946, %v1225
      %v1227 = vpop.f32.mrb[0].mxu0
      %v1228 = vpop.f32.mrb[0].mxu0
      %v1229 = vadd.f32 %v951, %v1228
      %v1230 = vpop.f32.mrb[0].mxu0
      %1231 = vmatprep.mubr.bf16.mxu0 0
      %1232 = vmatmul.mubr.bf16.gmra.mrb[0].mxu0 %v1132
      %v1233 = vpop.f32.mrb[0].mxu0
      %v1234 = vadd.f32 %v956, %v1233
      %v1235 = vpop.f32.mrb[0].mxu0
      %v1236 = vpop.f32.mrb[0].mxu0
      %v1237 = vadd.f32 %v961, %v1236
      %v1238 = vpop.f32.mrb[0].mxu0
      %1239 = vmatprep.mubr.bf16.mxu0 0
      %1240 = vmatmul.mubr.bf16.gmra.mrb[0].mxu0 %v1133
      %v1241 = vpop.f32.mrb[0].mxu0
      %v1242 = vadd.f32 %v966, %v1241
      %v1243 = vpop.f32.mrb[0].mxu0
      %v1244 = vpop.f32.mrb[0].mxu0
      %v1245 = vadd.f32 %v971, %v1244
      %v1246 = vpop.f32.mrb[0].mxu0
      %1247 = vmatprep.mubr.bf16.mxu0 0
      %1248 = vmatmul.mubr.bf16.gmra.mrb[0].mxu0 %v1134
      %v1249 = vpop.f32.mrb[0].mxu0
      %v1250 = vadd.f32 %v976, %v1249
      %v1251 = vpop.f32.mrb[0].mxu0
      %v1252 = vpop.f32.mrb[0].mxu0
      %v1253 = vadd.f32 %v981, %v1252
      %v1254 = vpop.f32.mrb[0].mxu0
      %1255 = vmatprep.mubr.bf16.mxu0 0
      %1256 = vmatmul.mubr.bf16.gmra.mrb[0].mxu0 %v1135
      %v1257 = vpop.f32.mrb[0].mxu0
      %v1258 = vadd.f32 %v986, %v1257
      %v1259 = vpop.f32.mrb[0].mxu0
      %v1260 = vpop.f32.mrb[0].mxu0
      %v1261 = vadd.f32 %v991, %v1260
      %v1262 = vpop.f32.mrb[0].mxu0
      %1263 = vmatprep.mubr.bf16.mxu0 0
      %1264 = vmatmul.mubr.bf16.gmra.mrb[0].mxu0 %v1136
      %v1265 = vpop.f32.mrb[0].mxu0
      %v1266 = vadd.f32 %v996, %v1265
      %v1267 = vpop.f32.mrb[0].mxu0
      %v1268 = vpop.f32.mrb[0].mxu0
      %v1269 = vadd.f32 %v1001, %v1268
      %v1270 = vpop.f32.mrb[0].mxu0
      %1271 = vmatprep.mubr.bf16.mxu0 0
      %1272 = vmatmul.mubr.bf16.gmra.mrb[0].mxu0 %v1137
      %v1273 = vpop.f32.mrb[0].mxu0
      %v1274 = vadd.f32 %v1006, %v1273
      %v1275 = vpop.f32.mrb[0].mxu0
      %v1276 = vpop.f32.mrb[0].mxu0
      %v1277 = vadd.f32 %v1011, %v1276
      %v1278 = vpop.f32.mrb[0].mxu0
      %1279 = vmatprep.mubr.bf16.mxu0 0
      %1280 = vmatmul.mubr.bf16.gmra.mrb[0].mxu0 %v1138
      %v1281 = vpop.f32.mrb[0].mxu0
      %v1282 = vadd.f32 %v1016, %v1281
      %v1283 = vpop.f32.mrb[0].mxu0
      %v1284 = vpop.f32.mrb[0].mxu0
      %v1285 = vadd.f32 %v1021, %v1284
      %v1286 = vpop.f32.mrb[0].mxu0
      %1287 = vmatprep.mubr.bf16.mxu0 0
      %1288 = vmatmul.mubr.bf16.gmra.mrb[0].mxu0 %v1139
      %v1289 = vpop.f32.mrb[0].mxu0
      %v1290 = vadd.f32 %v1026, %v1289
      %v1291 = vpop.f32.mrb[0].mxu0
      %v1292 = vpop.f32.mrb[0].mxu0
      %v1293 = vadd.f32 %v1031, %v1292
      %v1294 = vpop.f32.mrb[0].mxu0
      %1295 = vmatprep.mubr.bf16.mxu0 0
      %1296 = vmatmul.mubr.bf16.gmra.mrb[0].mxu0 %v1140
      %v1297 = vpop.f32.mrb[0].mxu0
      %v1298 = vadd.f32 %v1036, %v1297
      %v1299 = vpop.f32.mrb[0].mxu0
      %v1300 = vpop.f32.mrb[0].mxu0
      %v1301 = vadd.f32 %v1041, %v1300
      %v1302 = vpop.f32.mrb[0].mxu0
      %1303 = vmatprep.mubr.bf16.mxu0 0
      %1304 = vmatmul.mubr.bf16.gmra.mrb[0].mxu0 %v1141
      %v1305 = vpop.f32.mrb[0].mxu0
      %v1306 = vadd.f32 %v1046, %v1305
      %v1307 = vpop.f32.mrb[0].mxu0
      %v1308 = vpop.f32.mrb[0].mxu0
      %v1309 = vadd.f32 %v1051, %v1308
      %v1310 = vpop.f32.mrb[0].mxu0
      %1311 = vmatprep.mubr.bf16.mxu0 0
      %1312 = vmatmul.mubr.bf16.gmra.mrb[0].mxu0 %v1142
      %v1313 = vpop.f32.mrb[0].mxu0
      %v1314 = vadd.f32 %v1056, %v1313
      %v1315 = vpop.f32.mrb[0].mxu0
      %v1316 = vpop.f32.mrb[0].mxu0
      %v1317 = vadd.f32 %v1061, %v1316
      %v1318 = vpop.f32.mrb[0].mxu0
      %1319 = vdwg.mxu0
      %1320 = vmax.xlane.f32.xlu0 %v1194
      %v1321 = vpop.xlane.xlu0 %1320
      %1322 = vmax.xlane.f32.xlu0 %v1197
      %v1323 = vpop.xlane.xlu0 %1322
      %1324 = vmax.xlane.f32.xlu0 %v1202
      %v1325 = vpop.xlane.xlu0 %1324
      %1326 = vmax.xlane.f32.xlu0 %v1205
      %v1327 = vpop.xlane.xlu0 %1326
      %1328 = vmax.xlane.f32.xlu0 %v1210
      %v1329 = vpop.xlane.xlu0 %1328
      %1330 = vmax.xlane.f32.xlu0 %v1213
      %v1331 = vpop.xlane.xlu0 %1330
      %1332 = vmax.xlane.f32.xlu0 %v1218
      %v1333 = vpop.xlane.xlu0 %1332
      %1334 = vmax.xlane.f32.xlu0 %v1221
      %v1335 = vpop.xlane.xlu0 %1334
      %1336 = vmax.xlane.f32.xlu0 %v1226
      %v1337 = vpop.xlane.xlu0 %1336
      %1338 = vmax.xlane.f32.xlu0 %v1229
      %v1339 = vpop.xlane.xlu0 %1338
      %1340 = vmax.xlane.f32.xlu0 %v1234
      %v1341 = vpop.xlane.xlu0 %1340
      %1342 = vmax.xlane.f32.xlu0 %v1237
      %v1343 = vpop.xlane.xlu0 %1342
      %1344 = vmax.xlane.f32.xlu0 %v1242
      %v1345 = vpop.xlane.xlu0 %1344
      %1346 = vmax.xlane.f32.xlu0 %v1245
      %v1347 = vpop.xlane.xlu0 %1346
      %1348 = vmax.xlane.f32.xlu0 %v1250
      %v1349 = vpop.xlane.xlu0 %1348
      %1350 = vmax.xlane.f32.xlu0 %v1253
      %v1351 = vpop.xlane.xlu0 %1350
      %1352 = vmax.xlane.f32.xlu0 %v1258
      %v1353 = vpop.xlane.xlu0 %1352
      %1354 = vmax.xlane.f32.xlu0 %v1261
      %v1355 = vpop.xlane.xlu0 %1354
      %1356 = vmax.xlane.f32.xlu0 %v1266
      %v1357 = vpop.xlane.xlu0 %1356
      %1358 = vmax.xlane.f32.xlu0 %v1269
      %v1359 = vpop.xlane.xlu0 %1358
      %1360 = vmax.xlane.f32.xlu0 %v1274
      %v1361 = vpop.xlane.xlu0 %1360
      %1362 = vmax.xlane.f32.xlu0 %v1277
      %v1363 = vpop.xlane.xlu0 %1362
      %1364 = vmax.xlane.f32.xlu0 %v1282
      %v1365 = vpop.xlane.xlu0 %1364
      %1366 = vmax.xlane.f32.xlu0 %v1285
      %v1367 = vpop.xlane.xlu0 %1366
      %1368 = vmax.xlane.f32.xlu0 %v1290
      %v1369 = vpop.xlane.xlu0 %1368
      %1370 = vmax.xlane.f32.xlu0 %v1293
      %v1371 = vpop.xlane.xlu0 %1370
      %1372 = vmax.xlane.f32.xlu0 %v1298
      %v1373 = vpop.xlane.xlu0 %1372
      %1374 = vmax.xlane.f32.xlu0 %v1301
      %v1375 = vpop.xlane.xlu0 %1374
      %1376 = vmax.xlane.f32.xlu0 %v1306
      %v1377 = vpop.xlane.xlu0 %1376
      %1378 = vmax.xlane.f32.xlu0 %v1309
      %v1379 = vpop.xlane.xlu0 %1378
      %1380 = vmax.xlane.f32.xlu0 %v1314
      %v1381 = vpop.xlane.xlu0 %1380
      %1382 = vmax.xlane.f32.xlu0 %v1317
      %v1383 = vpop.xlane.xlu0 %1382
      %s1384 = scalar_lea.vmem %s315, 2
      %v1385 = vld [vmem:[%s1384] sm:$0x3]
      %s1386 = scalar_lea.vmem %s322, 32
      %v1387 = vld [vmem:[%s1386] sm:$0xf]
      %v1388 = vld [vmem:[%s1386 + $0x4] sm:$0xf]
      %v1389 = vld [vmem:[%s1386 + $0x8] sm:$0xf]
      %v1390 = vld [vmem:[%s1386 + $0xc] sm:$0xf]
      %v1391 = vld [vmem:[%s1386 + $0x10] sm:$0xf]
      %v1392 = vld [vmem:[%s1386 + $0x14] sm:$0xf]
      %v1393 = vld [vmem:[%s1386 + $0x18] sm:$0xf]
      %v1394 = vld [vmem:[%s1386 + $0x1c] sm:$0xf]
      %v1403 = vunpack.c.l.b16 %v1387
      %v1404 = vunpack.c.l.b16 %v1388
      %v1405 = vunpack.c.l.b16 %v1389
      %v1406 = vunpack.c.l.b16 %v1390
      %v1407 = vunpack.c.l.b16 %v1391
      %v1408 = vunpack.c.l.b16 %v1392
      %v1409 = vunpack.c.l.b16 %v1393
      %v1410 = vunpack.c.l.b16 %v1394
      %v1411 = vpack.c.b16 %v1404, %v1403
      %v1412 = vpack.c.b16 %v1406, %v1405
      %v1413 = vpack.c.b16 %v1408, %v1407
      %v1414 = vpack.c.b16 %v1410, %v1409
      %v1416 = vsel %vm540, %v1411, 0
      %v1419 = vsel %vm540, %v1412, 0
      %v1422 = vsel %vm540, %v1413, 0
      %v1425 = vsel %vm540, %v1414, 0
      %v1428 = vand.u32 %v1385, %v556
      %1430 = vmatprep.subr.bf16.mxu0 0
      %1431 = vmatpush1.bf16.msra.mxu0 %v1428
      %1432 = vmatprep.subr.bf16.mxu0 0
      %1433 = vmatpush1.bf16.msra.mxu0 0
      %1434 = vmatprep.subr.bf16.mxu0 0
      %1435 = vmatpush1.bf16.msra.mxu0 0
      %1436 = vmatprep.subr.bf16.mxu0 0
      %1437 = vmatpush1.bf16.msra.mxu0 0
      %1438 = vmatprep.subr.bf16.mxu0 0
      %1439 = vmatpush1.bf16.msra.mxu0 0
      %1440 = vmatprep.subr.bf16.mxu0 0
      %1441 = vmatpush1.bf16.msra.mxu0 0
      %1442 = vmatprep.subr.bf16.mxu0 0
      %1443 = vmatpush1.bf16.msra.mxu0 0
      %1444 = vmatprep.subr.bf16.mxu0 0
      %1445 = vmatpush1.bf16.msra.mxu0 0
      %1446 = vmatprep.subr.bf16.mxu0 0
      %1447 = vmatpush1.bf16.msra.mxu0 0
      %1448 = vmatprep.subr.bf16.mxu0 0
      %1449 = vmatpush1.bf16.msra.mxu0 0
      %1450 = vmatprep.subr.bf16.mxu0 0
      %1451 = vmatpush1.bf16.msra.mxu0 0
      %1452 = vmatprep.subr.bf16.mxu0 0
      %1453 = vmatpush1.bf16.msra.mxu0 0
      %1454 = vmatprep.subr.bf16.mxu0 0
      %1455 = vmatpush1.bf16.msra.mxu0 0
      %1456 = vmatprep.subr.bf16.mxu0 0
      %1457 = vmatpush1.bf16.msra.mxu0 0
      %1458 = vmatprep.subr.bf16.mxu0 0
      %1459 = vmatpush1.bf16.msra.mxu0 0
      %1460 = vmatprep.subr.bf16.mxu0 0
      %1461 = vmatpush1.bf16.msra.mxu0 0
      %1462 = vmatprep.mubr.bf16.mxu0 0
      %1463 = vmatmul.mubr.bf16.gmra.mrb[0].mxu0 %v1416
      %v1464 = vpop.f32.mrb[0].mxu0
      %v1465 = vadd.f32 %v483, %v1464
      %v1466 = vpop.f32.mrb[0].mxu0
      %v1467 = vpop.f32.mrb[0].mxu0
      %v1468 = vadd.f32 %v488, %v1467
      %v1469 = vpop.f32.mrb[0].mxu0
      %1470 = vmatprep.mubr.bf16.mxu0 0
      %1471 = vmatmul.mubr.bf16.gmra.mrb[0].mxu0 %v1419
      %v1472 = vpop.f32.mrb[0].mxu0
      %v1473 = vadd.f32 %v493, %v1472
      %v1474 = vpop.f32.mrb[0].mxu0
      %v1475 = vpop.f32.mrb[0].mxu0
      %v1476 = vadd.f32 %v498, %v1475
      %v1477 = vpop.f32.mrb[0].mxu0
      %1478 = vmatprep.mubr.bf16.mxu0 0
      %1479 = vmatmul.mubr.bf16.gmra.mrb[0].mxu0 %v1422
      %v1480 = vpop.f32.mrb[0].mxu0
      %v1481 = vadd.f32 %v503, %v1480
      %v1482 = vpop.f32.mrb[0].mxu0
      %v1483 = vpop.f32.mrb[0].mxu0
      %v1484 = vadd.f32 %v508, %v1483
      %v1485 = vpop.f32.mrb[0].mxu0
      %1486 = vmatprep.mubr.bf16.mxu0 0
      %1487 = vmatmul.mubr.bf16.gmra.mrb[0].mxu0 %v1425
      %v1488 = vpop.f32.mrb[0].mxu0
      %v1489 = vadd.f32 %v513, %v1488
      %v1490 = vpop.f32.mrb[0].mxu0
      %v1491 = vpop.f32.mrb[0].mxu0
      %v1492 = vadd.f32 %v518, %v1491
      %v1493 = vpop.f32.mrb[0].mxu0
      %1494 = vdwg.mxu0
      %v1495 = vmax.f32 %v1465, 0.0
      %v1496 = vmax.f32 %v1468, 0.0
      %v1497 = vmax.f32 %v1473, 0.0
      %v1498 = vmax.f32 %v1476, 0.0
      %v1499 = vmax.f32 %v1481, 0.0
      %v1500 = vmax.f32 %v1484, 0.0
      %v1501 = vmax.f32 %v1489, 0.0
      %v1502 = vmax.f32 %v1492, 0.0
      %v1503 = vpack.c.bf16 %v1496, %v1495
      %v1504 = vpack.c.bf16 %v1498, %v1497
      %v1505 = vpack.c.bf16 %v1500, %v1499
      %v1506 = vpack.c.bf16 %v1502, %v1501
      %1507 = vmatprep.subr.bf16.mxu0 0
      %1508 = vmatpush1.bf16.msra.mxu0 %v1503
      %1509 = vmatprep.subr.bf16.mxu0 0
      %1510 = vmatpush1.bf16.msra.mxu0 %v1504
      %1511 = vmatprep.subr.bf16.mxu0 0
      %1512 = vmatpush1.bf16.msra.mxu0 %v1505
      %1513 = vmatprep.subr.bf16.mxu0 0
      %1514 = vmatpush1.bf16.msra.mxu0 %v1506
      %1515 = vmatprep.subr.bf16.mxu0 0
      %1516 = vmatpush1.bf16.msra.mxu0 0
      %1517 = vmatprep.subr.bf16.mxu0 0
      %1518 = vmatpush1.bf16.msra.mxu0 0
      %1519 = vmatprep.subr.bf16.mxu0 0
      %1520 = vmatpush1.bf16.msra.mxu0 0
      %1521 = vmatprep.subr.bf16.mxu0 0
      %1522 = vmatpush1.bf16.msra.mxu0 0
      %1523 = vmatprep.subr.bf16.mxu0 0
      %1524 = vmatpush1.bf16.msra.mxu0 0
      %1525 = vmatprep.subr.bf16.mxu0 0
      %1526 = vmatpush1.bf16.msra.mxu0 0
      %1527 = vmatprep.subr.bf16.mxu0 0
      %1528 = vmatpush1.bf16.msra.mxu0 0
      %1529 = vmatprep.subr.bf16.mxu0 0
      %1530 = vmatpush1.bf16.msra.mxu0 0
      %1531 = vmatprep.subr.bf16.mxu0 0
      %1532 = vmatpush1.bf16.msra.mxu0 0
      %1533 = vmatprep.subr.bf16.mxu0 0
      %1534 = vmatpush1.bf16.msra.mxu0 0
      %1535 = vmatprep.subr.bf16.mxu0 0
      %1536 = vmatpush1.bf16.msra.mxu0 0
      %1537 = vmatprep.subr.bf16.mxu0 0
      %1538 = vmatpush1.bf16.msra.mxu0 0
      %1539 = vmatprep.mubr.bf16.mxu0 0
      %1540 = vmatmul.mubr.bf16.gmra.mrb[0].mxu0 %v759
      %v1541 = vpop.f32.mrb[0].mxu0
      %v1542 = vadd.f32 %v640, %v1541
      %v1543 = vpop.f32.mrb[0].mxu0
      %v1544 = vpop.f32.mrb[0].mxu0
      %v1545 = vadd.f32 %v645, %v1544
      %v1546 = vpop.f32.mrb[0].mxu0
      %1547 = vmatprep.mubr.bf16.mxu0 0
      %1548 = vmatmul.mubr.bf16.gmra.mrb[0].mxu0 %v762
      %v1549 = vpop.f32.mrb[0].mxu0
      %v1550 = vadd.f32 %v650, %v1549
      %v1551 = vpop.f32.mrb[0].mxu0
      %v1552 = vpop.f32.mrb[0].mxu0
      %v1553 = vadd.f32 %v655, %v1552
      %v1554 = vpop.f32.mrb[0].mxu0
      %1555 = vmatprep.mubr.bf16.mxu0 0
      %1556 = vmatmul.mubr.bf16.gmra.mrb[0].mxu0 %v765
      %v1557 = vpop.f32.mrb[0].mxu0
      %v1558 = vadd.f32 %v660, %v1557
      %v1559 = vpop.f32.mrb[0].mxu0
      %v1560 = vpop.f32.mrb[0].mxu0
      %v1561 = vadd.f32 %v665, %v1560
      %v1562 = vpop.f32.mrb[0].mxu0
      %1563 = vmatprep.mubr.bf16.mxu0 0
      %1564 = vmatmul.mubr.bf16.gmra.mrb[0].mxu0 %v768
      %v1565 = vpop.f32.mrb[0].mxu0
      %v1566 = vadd.f32 %v670, %v1565
      %v1567 = vpop.f32.mrb[0].mxu0
      %v1568 = vpop.f32.mrb[0].mxu0
      %v1569 = vadd.f32 %v675, %v1568
      %v1570 = vpop.f32.mrb[0].mxu0
      %1571 = vmatprep.mubr.bf16.mxu0 0
      %1572 = vmatmul.mubr.bf16.gmra.mrb[0].mxu0 %v771
      %v1573 = vpop.f32.mrb[0].mxu0
      %v1574 = vadd.f32 %v680, %v1573
      %v1575 = vpop.f32.mrb[0].mxu0
      %v1576 = vpop.f32.mrb[0].mxu0
      %v1577 = vadd.f32 %v685, %v1576
      %v1578 = vpop.f32.mrb[0].mxu0
      %1579 = vmatprep.mubr.bf16.mxu0 0
      %1580 = vmatmul.mubr.bf16.gmra.mrb[0].mxu0 %v774
      %v1581 = vpop.f32.mrb[0].mxu0
      %v1582 = vadd.f32 %v690, %v1581
      %v1583 = vpop.f32.mrb[0].mxu0
      %v1584 = vpop.f32.mrb[0].mxu0
      %v1585 = vadd.f32 %v695, %v1584
      %v1586 = vpop.f32.mrb[0].mxu0
      %1587 = vmatprep.mubr.bf16.mxu0 0
      %1588 = vmatmul.mubr.bf16.gmra.mrb[0].mxu0 %v777
      %v1589 = vpop.f32.mrb[0].mxu0
      %v1590 = vadd.f32 %v700, %v1589
      %v1591 = vpop.f32.mrb[0].mxu0
      %v1592 = vpop.f32.mrb[0].mxu0
      %v1593 = vadd.f32 %v705, %v1592
      %v1594 = vpop.f32.mrb[0].mxu0
      %1595 = vmatprep.mubr.bf16.mxu0 0
      %1596 = vmatmul.mubr.bf16.gmra.mrb[0].mxu0 %v780
      %v1597 = vpop.f32.mrb[0].mxu0
      %v1598 = vadd.f32 %v710, %v1597
      %v1599 = vpop.f32.mrb[0].mxu0
      %v1600 = vpop.f32.mrb[0].mxu0
      %v1601 = vadd.f32 %v715, %v1600
      %v1602 = vpop.f32.mrb[0].mxu0
      %1603 = vdwg.mxu0
      %v1604 = vmax.f32 %v1542, 0.0
      %v1605 = vmax.f32 %v1545, 0.0
      %v1606 = vmax.f32 %v1550, 0.0
      %v1607 = vmax.f32 %v1553, 0.0
      %v1608 = vmax.f32 %v1558, 0.0
      %v1609 = vmax.f32 %v1561, 0.0
      %v1610 = vmax.f32 %v1566, 0.0
      %v1611 = vmax.f32 %v1569, 0.0
      %v1612 = vmax.f32 %v1574, 0.0
      %v1613 = vmax.f32 %v1577, 0.0
      %v1614 = vmax.f32 %v1582, 0.0
      %v1615 = vmax.f32 %v1585, 0.0
      %v1616 = vmax.f32 %v1590, 0.0
      %v1617 = vmax.f32 %v1593, 0.0
      %v1618 = vmax.f32 %v1598, 0.0
      %v1619 = vmax.f32 %v1601, 0.0
      %v1620 = vpack.c.bf16 %v1605, %v1604
      %v1621 = vpack.c.bf16 %v1607, %v1606
      %v1622 = vpack.c.bf16 %v1609, %v1608
      %v1623 = vpack.c.bf16 %v1611, %v1610
      %v1624 = vpack.c.bf16 %v1613, %v1612
      %v1625 = vpack.c.bf16 %v1615, %v1614
      %v1626 = vpack.c.bf16 %v1617, %v1616
      %v1627 = vpack.c.bf16 %v1619, %v1618
      %1628 = vmatprep.subr.bf16.mxu0 0
      %1629 = vmatpush1.bf16.msra.mxu0 %v1620
      %1630 = vmatprep.subr.bf16.mxu0 0
      %1631 = vmatpush1.bf16.msra.mxu0 %v1621
      %1632 = vmatprep.subr.bf16.mxu0 0
      %1633 = vmatpush1.bf16.msra.mxu0 %v1622
      %1634 = vmatprep.subr.bf16.mxu0 0
      %1635 = vmatpush1.bf16.msra.mxu0 %v1623
      %1636 = vmatprep.subr.bf16.mxu0 0
      %1637 = vmatpush1.bf16.msra.mxu0 %v1624
      %1638 = vmatprep.subr.bf16.mxu0 0
      %1639 = vmatpush1.bf16.msra.mxu0 %v1625
      %1640 = vmatprep.subr.bf16.mxu0 0
      %1641 = vmatpush1.bf16.msra.mxu0 %v1626
      %1642 = vmatprep.subr.bf16.mxu0 0
      %1643 = vmatpush1.bf16.msra.mxu0 %v1627
      %1644 = vmatprep.subr.bf16.mxu0 0
      %1645 = vmatpush1.bf16.msra.mxu0 0
      %1646 = vmatprep.subr.bf16.mxu0 0
      %1647 = vmatpush1.bf16.msra.mxu0 0
      %1648 = vmatprep.subr.bf16.mxu0 0
      %1649 = vmatpush1.bf16.msra.mxu0 0
      %1650 = vmatprep.subr.bf16.mxu0 0
      %1651 = vmatpush1.bf16.msra.mxu0 0
      %1652 = vmatprep.subr.bf16.mxu0 0
      %1653 = vmatpush1.bf16.msra.mxu0 0
      %1654 = vmatprep.subr.bf16.mxu0 0
      %1655 = vmatpush1.bf16.msra.mxu0 0
      %1656 = vmatprep.subr.bf16.mxu0 0
      %1657 = vmatpush1.bf16.msra.mxu0 0
      %1658 = vmatprep.subr.bf16.mxu0 0
      %1659 = vmatpush1.bf16.msra.mxu0 0
      %1660 = vmatprep.mubr.bf16.mxu0 0
      %1661 = vmatmul.mubr.bf16.gmra.mrb[0].mxu0 %v1127
      %v1662 = vpop.f32.mrb[0].mxu0
      %v1663 = vadd.f32 %v906, %v1662
      %v1664 = vpop.f32.mrb[0].mxu0
      %v1665 = vpop.f32.mrb[0].mxu0
      %v1666 = vadd.f32 %v911, %v1665
      %v1667 = vpop.f32.mrb[0].mxu0
      %1668 = vmatprep.mubr.bf16.mxu0 0
      %1669 = vmatmul.mubr.bf16.gmra.mrb[0].mxu0 %v1128
      %v1670 = vpop.f32.mrb[0].mxu0
      %v1671 = vadd.f32 %v916, %v1670
      %v1672 = vpop.f32.mrb[0].mxu0
      %v1673 = vpop.f32.mrb[0].mxu0
      %v1674 = vadd.f32 %v921, %v1673
      %v1675 = vpop.f32.mrb[0].mxu0
      %1676 = vmatprep.mubr.bf16.mxu0 0
      %1677 = vmatmul.mubr.bf16.gmra.mrb[0].mxu0 %v1129
      %v1678 = vpop.f32.mrb[0].mxu0
      %v1679 = vadd.f32 %v926, %v1678
      %v1680 = vpop.f32.mrb[0].mxu0
      %v1681 = vpop.f32.mrb[0].mxu0
      %v1682 = vadd.f32 %v931, %v1681
      %v1683 = vpop.f32.mrb[0].mxu0
      %1684 = vmatprep.mubr.bf16.mxu0 0
      %1685 = vmatmul.mubr.bf16.gmra.mrb[0].mxu0 %v1130
      %v1686 = vpop.f32.mrb[0].mxu0
      %v1687 = vadd.f32 %v936, %v1686
      %v1688 = vpop.f32.mrb[0].mxu0
      %v1689 = vpop.f32.mrb[0].mxu0
      %v1690 = vadd.f32 %v941, %v1689
      %v1691 = vpop.f32.mrb[0].mxu0
      %1692 = vmatprep.mubr.bf16.mxu0 0
      %1693 = vmatmul.mubr.bf16.gmra.mrb[0].mxu0 %v1131
      %v1694 = vpop.f32.mrb[0].mxu0
      %v1695 = vadd.f32 %v946, %v1694
      %v1696 = vpop.f32.mrb[0].mxu0
      %v1697 = vpop.f32.mrb[0].mxu0
      %v1698 = vadd.f32 %v951, %v1697
      %v1699 = vpop.f32.mrb[0].mxu0
      %1700 = vmatprep.mubr.bf16.mxu0 0
      %1701 = vmatmul.mubr.bf16.gmra.mrb[0].mxu0 %v1132
      %v1702 = vpop.f32.mrb[0].mxu0
      %v1703 = vadd.f32 %v956, %v1702
      %v1704 = vpop.f32.mrb[0].mxu0
      %v1705 = vpop.f32.mrb[0].mxu0
      %v1706 = vadd.f32 %v961, %v1705
      %v1707 = vpop.f32.mrb[0].mxu0
      %1708 = vmatprep.mubr.bf16.mxu0 0
      %1709 = vmatmul.mubr.bf16.gmra.mrb[0].mxu0 %v1133
      %v1710 = vpop.f32.mrb[0].mxu0
      %v1711 = vadd.f32 %v966, %v1710
      %v1712 = vpop.f32.mrb[0].mxu0
      %v1713 = vpop.f32.mrb[0].mxu0
      %v1714 = vadd.f32 %v971, %v1713
      %v1715 = vpop.f32.mrb[0].mxu0
      %1716 = vmatprep.mubr.bf16.mxu0 0
      %1717 = vmatmul.mubr.bf16.gmra.mrb[0].mxu0 %v1134
      %v1718 = vpop.f32.mrb[0].mxu0
      %v1719 = vadd.f32 %v976, %v1718
      %v1720 = vpop.f32.mrb[0].mxu0
      %v1721 = vpop.f32.mrb[0].mxu0
      %v1722 = vadd.f32 %v981, %v1721
      %v1723 = vpop.f32.mrb[0].mxu0
      %1724 = vmatprep.mubr.bf16.mxu0 0
      %1725 = vmatmul.mubr.bf16.gmra.mrb[0].mxu0 %v1135
      %v1726 = vpop.f32.mrb[0].mxu0
      %v1727 = vadd.f32 %v986, %v1726
      %v1728 = vpop.f32.mrb[0].mxu0
      %v1729 = vpop.f32.mrb[0].mxu0
      %v1730 = vadd.f32 %v991, %v1729
      %v1731 = vpop.f32.mrb[0].mxu0
      %1732 = vmatprep.mubr.bf16.mxu0 0
      %1733 = vmatmul.mubr.bf16.gmra.mrb[0].mxu0 %v1136
      %v1734 = vpop.f32.mrb[0].mxu0
      %v1735 = vadd.f32 %v996, %v1734
      %v1736 = vpop.f32.mrb[0].mxu0
      %v1737 = vpop.f32.mrb[0].mxu0
      %v1738 = vadd.f32 %v1001, %v1737
      %v1739 = vpop.f32.mrb[0].mxu0
      %1740 = vmatprep.mubr.bf16.mxu0 0
      %1741 = vmatmul.mubr.bf16.gmra.mrb[0].mxu0 %v1137
      %v1742 = vpop.f32.mrb[0].mxu0
      %v1743 = vadd.f32 %v1006, %v1742
      %v1744 = vpop.f32.mrb[0].mxu0
      %v1745 = vpop.f32.mrb[0].mxu0
      %v1746 = vadd.f32 %v1011, %v1745
      %v1747 = vpop.f32.mrb[0].mxu0
      %1748 = vmatprep.mubr.bf16.mxu0 0
      %1749 = vmatmul.mubr.bf16.gmra.mrb[0].mxu0 %v1138
      %v1750 = vpop.f32.mrb[0].mxu0
      %v1751 = vadd.f32 %v1016, %v1750
      %v1752 = vpop.f32.mrb[0].mxu0
      %v1753 = vpop.f32.mrb[0].mxu0
      %v1754 = vadd.f32 %v1021, %v1753
      %v1755 = vpop.f32.mrb[0].mxu0
      %1756 = vmatprep.mubr.bf16.mxu0 0
      %1757 = vmatmul.mubr.bf16.gmra.mrb[0].mxu0 %v1139
      %v1758 = vpop.f32.mrb[0].mxu0
      %v1759 = vadd.f32 %v1026, %v1758
      %v1760 = vpop.f32.mrb[0].mxu0
      %v1761 = vpop.f32.mrb[0].mxu0
      %v1762 = vadd.f32 %v1031, %v1761
      %v1763 = vpop.f32.mrb[0].mxu0
      %1764 = vmatprep.mubr.bf16.mxu0 0
      %1765 = vmatmul.mubr.bf16.gmra.mrb[0].mxu0 %v1140
      %v1766 = vpop.f32.mrb[0].mxu0
      %v1767 = vadd.f32 %v1036, %v1766
      %v1768 = vpop.f32.mrb[0].mxu0
      %v1769 = vpop.f32.mrb[0].mxu0
      %v1770 = vadd.f32 %v1041, %v1769
      %v1771 = vpop.f32.mrb[0].mxu0
      %1772 = vmatprep.mubr.bf16.mxu0 0
      %1773 = vmatmul.mubr.bf16.gmra.mrb[0].mxu0 %v1141
      %v1774 = vpop.f32.mrb[0].mxu0
      %v1775 = vadd.f32 %v1046, %v1774
      %v1776 = vpop.f32.mrb[0].mxu0
      %v1777 = vpop.f32.mrb[0].mxu0
      %v1778 = vadd.f32 %v1051, %v1777
      %v1779 = vpop.f32.mrb[0].mxu0
      %1780 = vmatprep.mubr.bf16.mxu0 0
      %1781 = vmatmul.mubr.bf16.gmra.mrb[0].mxu0 %v1142
      %v1782 = vpop.f32.mrb[0].mxu0
      %v1783 = vadd.f32 %v1056, %v1782
      %v1784 = vpop.f32.mrb[0].mxu0
      %v1785 = vpop.f32.mrb[0].mxu0
      %v1786 = vadd.f32 %v1061, %v1785
      %v1787 = vpop.f32.mrb[0].mxu0
      %1788 = vdwg.mxu0
      %1789 = vmax.xlane.f32.xlu0 %v1663
      %v1790 = vpop.xlane.xlu0 %1789
      %1791 = vmax.xlane.f32.xlu0 %v1666
      %v1792 = vpop.xlane.xlu0 %1791
      %1793 = vmax.xlane.f32.xlu0 %v1671
      %v1794 = vpop.xlane.xlu0 %1793
      %1795 = vmax.xlane.f32.xlu0 %v1674
      %v1796 = vpop.xlane.xlu0 %1795
      %1797 = vmax.xlane.f32.xlu0 %v1679
      %v1798 = vpop.xlane.xlu0 %1797
      %1799 = vmax.xlane.f32.xlu0 %v1682
      %v1800 = vpop.xlane.xlu0 %1799
      %1801 = vmax.xlane.f32.xlu0 %v1687
      %v1802 = vpop.xlane.xlu0 %1801
      %1803 = vmax.xlane.f32.xlu0 %v1690
      %v1804 = vpop.xlane.xlu0 %1803
      %1805 = vmax.xlane.f32.xlu0 %v1695
      %v1806 = vpop.xlane.xlu0 %1805
      %1807 = vmax.xlane.f32.xlu0 %v1698
      %v1808 = vpop.xlane.xlu0 %1807
      %1809 = vmax.xlane.f32.xlu0 %v1703
      %v1810 = vpop.xlane.xlu0 %1809
      %1811 = vmax.xlane.f32.xlu0 %v1706
      %v1812 = vpop.xlane.xlu0 %1811
      %1813 = vmax.xlane.f32.xlu0 %v1711
      %v1814 = vpop.xlane.xlu0 %1813
      %1815 = vmax.xlane.f32.xlu0 %v1714
      %v1816 = vpop.xlane.xlu0 %1815
      %1817 = vmax.xlane.f32.xlu0 %v1719
      %v1818 = vpop.xlane.xlu0 %1817
      %1819 = vmax.xlane.f32.xlu0 %v1722
      %v1820 = vpop.xlane.xlu0 %1819
      %1821 = vmax.xlane.f32.xlu0 %v1727
      %v1822 = vpop.xlane.xlu0 %1821
      %1823 = vmax.xlane.f32.xlu0 %v1730
      %v1824 = vpop.xlane.xlu0 %1823
      %1825 = vmax.xlane.f32.xlu0 %v1735
      %v1826 = vpop.xlane.xlu0 %1825
      %1827 = vmax.xlane.f32.xlu0 %v1738
      %v1828 = vpop.xlane.xlu0 %1827
      %1829 = vmax.xlane.f32.xlu0 %v1743
      %v1830 = vpop.xlane.xlu0 %1829
      %1831 = vmax.xlane.f32.xlu0 %v1746
      %v1832 = vpop.xlane.xlu0 %1831
      %1833 = vmax.xlane.f32.xlu0 %v1751
      %v1834 = vpop.xlane.xlu0 %1833
      %1835 = vmax.xlane.f32.xlu0 %v1754
      %v1836 = vpop.xlane.xlu0 %1835
      %1837 = vmax.xlane.f32.xlu0 %v1759
      %v1838 = vpop.xlane.xlu0 %1837
      %1839 = vmax.xlane.f32.xlu0 %v1762
      %v1840 = vpop.xlane.xlu0 %1839
      %1841 = vmax.xlane.f32.xlu0 %v1767
      %v1842 = vpop.xlane.xlu0 %1841
      %1843 = vmax.xlane.f32.xlu0 %v1770
      %v1844 = vpop.xlane.xlu0 %1843
      %1845 = vmax.xlane.f32.xlu0 %v1775
      %v1846 = vpop.xlane.xlu0 %1845
      %1847 = vmax.xlane.f32.xlu0 %v1778
      %v1848 = vpop.xlane.xlu0 %1847
      %1849 = vmax.xlane.f32.xlu0 %v1783
      %v1850 = vpop.xlane.xlu0 %1849
      %1851 = vmax.xlane.f32.xlu0 %v1786
      %v1852 = vpop.xlane.xlu0 %1851
      %vm1853 = vcmask 7168
      %v1854 = vsel %vm1853, %v1321, %v1790
      %v1855 = vsel %vm1853, %v1323, %v1792
      %v1856 = vsel %vm1853, %v1325, %v1794
      %v1857 = vsel %vm1853, %v1327, %v1796
      %v1858 = vsel %vm1853, %v1329, %v1798
      %v1859 = vsel %vm1853, %v1331, %v1800
      %v1860 = vsel %vm1853, %v1333, %v1802
      %v1861 = vsel %vm1853, %v1335, %v1804
      %v1862 = vsel %vm1853, %v1337, %v1806
      %v1863 = vsel %vm1853, %v1339, %v1808
      %v1864 = vsel %vm1853, %v1341, %v1810
      %v1865 = vsel %vm1853, %v1343, %v1812
      %v1866 = vsel %vm1853, %v1345, %v1814
      %v1867 = vsel %vm1853, %v1347, %v1816
      %v1868 = vsel %vm1853, %v1349, %v1818
      %v1869 = vsel %vm1853, %v1351, %v1820
      %v1870 = vsel %vm1853, %v1353, %v1822
      %v1871 = vsel %vm1853, %v1355, %v1824
      %v1872 = vsel %vm1853, %v1357, %v1826
      %v1873 = vsel %vm1853, %v1359, %v1828
      %v1874 = vsel %vm1853, %v1361, %v1830
      %v1875 = vsel %vm1853, %v1363, %v1832
      %v1876 = vsel %vm1853, %v1365, %v1834
      %v1877 = vsel %vm1853, %v1367, %v1836
      %v1878 = vsel %vm1853, %v1369, %v1838
      %v1879 = vsel %vm1853, %v1371, %v1840
      %v1880 = vsel %vm1853, %v1373, %v1842
      %v1881 = vsel %vm1853, %v1375, %v1844
      %v1882 = vsel %vm1853, %v1377, %v1846
      %v1883 = vsel %vm1853, %v1379, %v1848
      %v1884 = vsel %vm1853, %v1381, %v1850
      %v1885 = vsel %vm1853, %v1383, %v1852
      %v1886 = vld [vmem:[%s328] sm:$0xff]
      %v1887 = vld [vmem:[%s328 + $0x8] sm:$0xff]
      %v1888 = vld [vmem:[%s328 + $0x10] sm:$0xff]
      %v1889 = vld [vmem:[%s328 + $0x18] sm:$0xff]
      %v1890 = vld [vmem:[%s328 + $0x20] sm:$0xff]
      %v1891 = vld [vmem:[%s328 + $0x28] sm:$0xff]
      %v1892 = vld [vmem:[%s328 + $0x30] sm:$0xff]
      %v1893 = vld [vmem:[%s328 + $0x38] sm:$0xff]
      %v1894 = vld [vmem:[%s328 + $0x40] sm:$0xff]
      %v1895 = vld [vmem:[%s328 + $0x48] sm:$0xff]
      %v1896 = vld [vmem:[%s328 + $0x50] sm:$0xff]
      %v1897 = vld [vmem:[%s328 + $0x58] sm:$0xff]
      %v1898 = vld [vmem:[%s328 + $0x60] sm:$0xff]
      %v1899 = vld [vmem:[%s328 + $0x68] sm:$0xff]
      %v1900 = vld [vmem:[%s328 + $0x70] sm:$0xff]
      %v1901 = vld [vmem:[%s328 + $0x78] sm:$0xff]
      %v1902 = vld [vmem:[%s328 + $0x80] sm:$0xff]
      %v1903 = vld [vmem:[%s328 + $0x88] sm:$0xff]
      %v1904 = vld [vmem:[%s328 + $0x90] sm:$0xff]
      %v1905 = vld [vmem:[%s328 + $0x98] sm:$0xff]
      %v1906 = vld [vmem:[%s328 + $0xa0] sm:$0xff]
      %v1907 = vld [vmem:[%s328 + $0xa8] sm:$0xff]
      %v1908 = vld [vmem:[%s328 + $0xb0] sm:$0xff]
      %v1909 = vld [vmem:[%s328 + $0xb8] sm:$0xff]
      %v1910 = vld [vmem:[%s328 + $0xc0] sm:$0xff]
      %v1911 = vld [vmem:[%s328 + $0xc8] sm:$0xff]
      %v1912 = vld [vmem:[%s328 + $0xd0] sm:$0xff]
      %v1913 = vld [vmem:[%s328 + $0xd8] sm:$0xff]
      %v1914 = vld [vmem:[%s328 + $0xe0] sm:$0xff]
      %v1915 = vld [vmem:[%s328 + $0xe8] sm:$0xff]
      %v1916 = vld [vmem:[%s328 + $0xf0] sm:$0xff]
      %v1917 = vld [vmem:[%s328 + $0xf8] sm:$0xff]
      %v1918 = vmax.f32 %v1886, %v1854
      %v1919 = vmax.f32 %v1887, %v1855
      %v1920 = vmax.f32 %v1888, %v1856
      %v1921 = vmax.f32 %v1889, %v1857
      %v1922 = vmax.f32 %v1890, %v1858
      %v1923 = vmax.f32 %v1891, %v1859
      %v1924 = vmax.f32 %v1892, %v1860
      %v1925 = vmax.f32 %v1893, %v1861
      %v1926 = vmax.f32 %v1894, %v1862
      %v1927 = vmax.f32 %v1895, %v1863
      %v1928 = vmax.f32 %v1896, %v1864
      %v1929 = vmax.f32 %v1897, %v1865
      %v1930 = vmax.f32 %v1898, %v1866
      %v1931 = vmax.f32 %v1899, %v1867
      %v1932 = vmax.f32 %v1900, %v1868
      %v1933 = vmax.f32 %v1901, %v1869
      %v1934 = vmax.f32 %v1902, %v1870
      %v1935 = vmax.f32 %v1903, %v1871
      %v1936 = vmax.f32 %v1904, %v1872
      %v1937 = vmax.f32 %v1905, %v1873
      %v1938 = vmax.f32 %v1906, %v1874
      %v1939 = vmax.f32 %v1907, %v1875
      %v1940 = vmax.f32 %v1908, %v1876
      %v1941 = vmax.f32 %v1909, %v1877
      %v1942 = vmax.f32 %v1910, %v1878
      %v1943 = vmax.f32 %v1911, %v1879
      %v1944 = vmax.f32 %v1912, %v1880
      %v1945 = vmax.f32 %v1913, %v1881
      %v1946 = vmax.f32 %v1914, %v1882
      %v1947 = vmax.f32 %v1915, %v1883
      %v1948 = vmax.f32 %v1916, %v1884
      %v1949 = vmax.f32 %v1917, %v1885
      %vm1950 = vcmask 15360
      %1951 = vst.msk [vmem:[%s328] sm:$0xff] %vm1950, %v1918
      %1952 = vst.msk [vmem:[%s328 + $0x8] sm:$0xff] %vm1950, %v1919
      %1953 = vst.msk [vmem:[%s328 + $0x10] sm:$0xff] %vm1950, %v1920
      %1954 = vst.msk [vmem:[%s328 + $0x18] sm:$0xff] %vm1950, %v1921
      %1955 = vst.msk [vmem:[%s328 + $0x20] sm:$0xff] %vm1950, %v1922
      %1956 = vst.msk [vmem:[%s328 + $0x28] sm:$0xff] %vm1950, %v1923
      %1957 = vst.msk [vmem:[%s328 + $0x30] sm:$0xff] %vm1950, %v1924
      %1958 = vst.msk [vmem:[%s328 + $0x38] sm:$0xff] %vm1950, %v1925
      %1959 = vst.msk [vmem:[%s328 + $0x40] sm:$0xff] %vm1950, %v1926
      %1960 = vst.msk [vmem:[%s328 + $0x48] sm:$0xff] %vm1950, %v1927
      %1961 = vst.msk [vmem:[%s328 + $0x50] sm:$0xff] %vm1950, %v1928
      %1962 = vst.msk [vmem:[%s328 + $0x58] sm:$0xff] %vm1950, %v1929
      %1963 = vst.msk [vmem:[%s328 + $0x60] sm:$0xff] %vm1950, %v1930
      %1964 = vst.msk [vmem:[%s328 + $0x68] sm:$0xff] %vm1950, %v1931
      %1965 = vst.msk [vmem:[%s328 + $0x70] sm:$0xff] %vm1950, %v1932
      %1966 = vst.msk [vmem:[%s328 + $0x78] sm:$0xff] %vm1950, %v1933
      %1967 = vst.msk [vmem:[%s328 + $0x80] sm:$0xff] %vm1950, %v1934
      %1968 = vst.msk [vmem:[%s328 + $0x88] sm:$0xff] %vm1950, %v1935
      %1969 = vst.msk [vmem:[%s328 + $0x90] sm:$0xff] %vm1950, %v1936
      %1970 = vst.msk [vmem:[%s328 + $0x98] sm:$0xff] %vm1950, %v1937
      %1971 = vst.msk [vmem:[%s328 + $0xa0] sm:$0xff] %vm1950, %v1938
      %1972 = vst.msk [vmem:[%s328 + $0xa8] sm:$0xff] %vm1950, %v1939
      %1973 = vst.msk [vmem:[%s328 + $0xb0] sm:$0xff] %vm1950, %v1940
      %1974 = vst.msk [vmem:[%s328 + $0xb8] sm:$0xff] %vm1950, %v1941
      %1975 = vst.msk [vmem:[%s328 + $0xc0] sm:$0xff] %vm1950, %v1942
      %1976 = vst.msk [vmem:[%s328 + $0xc8] sm:$0xff] %vm1950, %v1943
      %1977 = vst.msk [vmem:[%s328 + $0xd0] sm:$0xff] %vm1950, %v1944
      %1978 = vst.msk [vmem:[%s328 + $0xd8] sm:$0xff] %vm1950, %v1945
      %1979 = vst.msk [vmem:[%s328 + $0xe0] sm:$0xff] %vm1950, %v1946
      %1980 = vst.msk [vmem:[%s328 + $0xe8] sm:$0xff] %vm1950, %v1947
      %1981 = vst.msk [vmem:[%s328 + $0xf0] sm:$0xff] %vm1950, %v1948
      %1982 = vst.msk [vmem:[%s328 + $0xf8] sm:$0xff] %vm1950, %v1949
      %p1983 = scmp.lt.s32.totalorder %s22, 1
      %s1984 = scalar_select %p1983, %s22, 1
      %s1985 = smul.addr %s1984, 32
      %s1986 = smul.addr %s1985, 8
      %s1987 = scalar_lea.vmem %s7, %s1986
      // Predicated region
      $region53: #{pointnetv2_treg_forward.1} parent=47 // pred_check
        %p1988 = pneg %p207
      $region54: #{pointnetv2_treg_forward.1} parent=47 // pred_check_branch
        %1990 = sbr.rel (%p1988) target = $region56
      $region55: #{pointnetv2_treg_forward.1} parent=47 // pred_region
        _
      $region56: #{pointnetv2_treg_forward.1} parent=47 // pred_fallthru
        _
    $region48: #{pointnetv2_treg_forward.1} parent=5 // pred_fallthru
      _
    %p1991 = scmp.le.s32.totalorder 2, %s13
    // Predicated region
    $region57: #{pointnetv2_treg_forward.1} parent=5 // pred_check
      %p1992 = pneg %p1991
    $region58: #{pointnetv2_treg_forward.1} parent=5 // pred_check_branch
      %1994 = sbr.rel (%p1992) target = $region60
    $region59: #{pointnetv2_treg_forward.1} parent=5 // pred_region
      %s1995 = ssub.s32 %s13, 2
      // Predicated region
      $region61: #{pointnetv2_treg_forward.1} parent=59 // pred_check
        %p1996 = pneg %p213
      $region62: #{pointnetv2_treg_forward.1} parent=59 // pred_check_branch
        %1998 = sbr.rel (%p1996) target = $region64
      $region63: #{pointnetv2_treg_forward.1} parent=59 // pred_region
        %p1999 = scmp.lt.s32.totalorder %s24, 1
        %s2000 = scalar_select %p1999, %s24, 1
        %s2001 = smul.addr %s2000, 32
        %s2002 = smul.addr %s2001, 8
        %s2003 = scalar_lea.vmem %s7, %s2002
      $region64: #{pointnetv2_treg_forward.1} parent=59 // pred_fallthru
        _
    $region60: #{pointnetv2_treg_forward.1} parent=5 // pred_fallthru
      _
  $region6: #{pointnetv2_treg_forward.1} parent=0 // loop_footer
    %s17 = sadd.s32 1, %s13
  $region7: #{pointnetv2_treg_forward.1} parent=0 // loop_footer_branch
    %12 = sbr.rel target = $region3
  $region8: #{pointnetv2_treg_forward.1} parent=0 // loop_exit
    _

</llo_original>
